<compile_context>
chip_gen: v6e
topology: v6e:2x2x1
jax: 0.10.0
libtpu: 0.0.40
codegen_flags: <defaults>
</compile_context>

<pallas_src>
import functools

import jax
import jax.numpy as jnp
from jax.experimental import pallas as pl
from jax.experimental.pallas import tpu as pltpu


def _dwcorr_kernel(t_ref, s_ref, o_ref, *scratch,
                   Ht, Wt, To, Wo, Hs, Ws, pad):
    # t_ref: (Ht, Wt, TL)   template block, (batch*channel) on lanes
    # s_ref: (Hs, Ws, TL)   unpadded search block (full spatial extent)
    # o_ref: (To, Wo, TL)   output row-tile, lane-dense
    TL = o_ref.shape[-1]
    row0 = pl.program_id(1) * To          # first output row of this block

    if pad > 0:
        spad_ref = scratch[0]
        Hp = Hs + 2 * pad
        Wp = Ws + 2 * pad

        # Build the padded search scratch once per lane block.  The row axis
        # is innermost and "arbitrary" (never sharded across cores), so
        # program_id(1) == 0 is guaranteed to run first on every core that
        # owns this lane block.  Only the halo strips are zeroed.
        @pl.when(pl.program_id(1) == 0)
        def _init_spad():
            zr = jnp.zeros((pad, Wp, TL), spad_ref.dtype)
            zc = jnp.zeros((Hs, pad, TL), spad_ref.dtype)
            spad_ref[0:pad, :, :] = zr                       # top halo
            spad_ref[pad + Hs:Hp, :, :] = zr                 # bottom halo
            spad_ref[pad:pad + Hs, 0:pad, :] = zc            # left halo
            spad_ref[pad:pad + Hs, pad + Ws:Wp, :] = zc      # right halo
            spad_ref[pad:pad + Hs, pad:pad + Ws, :] = s_ref[...]

        src = spad_ref
    else:
        src = s_ref

    # Accumulator is a loop-carried value sized (via To) to fit in vregs.
    acc0 = jnp.zeros((To, Wo, TL), jnp.float32)

    def row_body(i, acc):
        for j in range(Wt):                              # small static unroll
            # Per-tap weight: (1, 1, TL) ref slice, broadcasts in the mul.
            w = t_ref[pl.ds(i, 1), pl.ds(j, 1), :]
            # Shifted window loaded directly from the ref (plain vld),
            # no materialized band, no value-level sublane slicing.
            win = src[pl.ds(row0 + i, To), pl.ds(j, Wo), :]
            # Multiply in the input dtype; widen only on accumulation
            # (keeps bf16 windows packed on v6e/v7x; f32 path unchanged).
            acc = acc + (win * w).astype(jnp.float32)
        return acc

    acc = jax.lax.fori_loop(0, Ht, row_body, acc0, unroll=True)
    o_ref[...] = acc.astype(o_ref.dtype)


def depthwise_correlation(template_features, search_features, padding=0):
    """Pallas implementation of DepthwiseCorrelation.forward (NCHW API)."""
    B, C, Ht, Wt = template_features.shape
    Bs, Cs, Hs, Ws = search_features.shape
    assert C == Cs, "channel mismatch"
    assert B == Bs, "batch mismatch"

    Hp, Wp = Hs + 2 * padding, Ws + 2 * padding
    Ho, Wo = Hp - Ht + 1, Wp - Wt + 1
    assert Ho > 0 and Wo > 0, "template larger than (padded) search map"

    out_dtype = search_features.dtype

    # ---- layout: fold batch and channel into the lane axis --------------
    # (B, C, H, W) -> (H, W, B, C) -> (H, W, B*C)
    L = B * C
    t_l = jnp.transpose(template_features, (2, 3, 0, 1)).reshape(Ht, Wt, L)
    s_l = jnp.transpose(search_features, (2, 3, 0, 1)).reshape(Hs, Ws, L)

    # Lane blocking: full width if <= 128, otherwise 128-wide tiles
    # (zero-pad the lane axis to a multiple of 128 — zero template lanes
    # produce zero outputs that are sliced off afterwards).
    if L <= 128:
        TL, Lp = L, L
    else:
        TL = 128
        Lp = ((L + 127) // 128) * 128
        if Lp != L:
            t_l = jnp.pad(t_l, ((0, 0), (0, 0), (0, Lp - L)))
            s_l = jnp.pad(s_l, ((0, 0), (0, 0), (0, Lp - L)))
    n_lane = Lp // TL

    # ---- output-row tiling: bound the live f32 accumulator to vregs -----
    # acc is (To, Wo, TL) f32; keep it under ~112 KiB (≈ half the 256 KiB
    # vreg file) so the fully-unrolled tap loop never spills.
    acc_budget = 112 * 1024
    row_bytes = Wo * TL * 4
    divisors = [d for d in range(1, Ho + 1) if Ho % d == 0]
    fitting = [d for d in divisors if d * row_bytes <= acc_budget] or [1]
    To = max(fitting)
    # Guarantee >= 2 grid steps (v7x has 2 TensorCores; also gives the
    # auto-pipeline something to overlap) whenever the shape allows it.
    if n_lane * (Ho // To) < 2 and Ho > 1:
        smaller = [d for d in fitting if d < Ho]
        if smaller:
            To = max(smaller)
    n_row = Ho // To

    kernel = functools.partial(
        _dwcorr_kernel, Ht=Ht, Wt=Wt, To=To, Wo=Wo, Hs=Hs, Ws=Ws, pad=padding)

    scratch_shapes = []
    if padding > 0:
        scratch_shapes.append(pltpu.VMEM((Hp, Wp, TL), search_features.dtype))

    # With padding, the row axis must stay "arbitrary" so the per-lane-block
    # spad init guard runs on every core; without padding both axes are
    # independent and can be sharded freely.
    if padding > 0:
        dim_sem = ("parallel", "arbitrary")
    else:
        dim_sem = ("parallel", "parallel")

    # Advisory cost estimate: memory-bound, FLOPs are tiny.
    cost = pl.CostEstimate(
        flops=2 * B * C * Ho * Wo * Ht * Wt,
        transcendentals=0,
        bytes_accessed=(t_l.size * t_l.dtype.itemsize
                        + s_l.size * s_l.dtype.itemsize
                        + Ho * Wo * Lp * jnp.dtype(out_dtype).itemsize),
    )

    out_l = pl.pallas_call(
        kernel,
        out_shape=jax.ShapeDtypeStruct((Ho, Wo, Lp), out_dtype),
        # Lane axis outermost (template/search blocks only change with it,
        # so they are DMA'd once per lane block); output-row axis innermost.
        grid=(n_lane, n_row),
        in_specs=[
            pl.BlockSpec((Ht, Wt, TL), lambda l, r: (0, 0, l)),
            pl.BlockSpec((Hs, Ws, TL), lambda l, r: (0, 0, l)),
        ],
        out_specs=pl.BlockSpec((To, Wo, TL), lambda l, r: (r, 0, l)),
        scratch_shapes=scratch_shapes,
        compiler_params=pltpu.CompilerParams(dimension_semantics=dim_sem),
        cost_estimate=cost,
    )(t_l, s_l)

    # Back to NCHW (layout plumbing; see module-level note).
    out = out_l[:, :, :L].reshape(Ho, Wo, B, C)
    return jnp.transpose(out, (2, 3, 0, 1))


def _reference(template_features, search_features, padding=0):
    """Plain-JAX reference: per-batch depthwise (grouped) correlation."""
    B, C, Ht, Wt = template_features.shape
    outs = []
    for b in range(B):
        w = template_features[b][:, None, :, :]        # (C, 1, Ht, Wt)
        o = jax.lax.conv_general_dilated(
            search_features[b:b + 1],
            w,
            window_strides=(1, 1),
            padding=[(padding, padding), (padding, padding)],
            feature_group_count=C,
            dimension_numbers=("NCHW", "OIHW", "NCHW"),
        )
        outs.append(o)
    return jnp.concatenate(outs, axis=0)


if __name__ == "__main__":
    key = jax.random.PRNGKey(0)
    k_t, k_s = jax.random.split(key)

    B, C = 2, 32
    H_t, W_t = 8, 8     # template spatial
    H_s, W_s = 16, 16   # search spatial -> 9x9 output at padding=0

    template = jax.random.normal(k_t, (B, C, H_t, W_t), dtype=jnp.float32)
    search = jax.random.normal(k_s, (B, C, H_s, W_s), dtype=jnp.float32)

    for pad in (0, 2):
        out = depthwise_correlation(template, search, padding=pad)
        out = jax.block_until_ready(out)

        ref = _reference(template, search, padding=pad)
        Ho = H_s + 2 * pad - H_t + 1
        Wo = W_s + 2 * pad - W_t + 1
        assert out.shape == (B, C, Ho, Wo), out.shape
        assert jnp.allclose(out, ref, atol=1e-4, rtol=1e-4), (
            f"mismatch vs reference at padding={pad}")

    print("KERNEL_OK")
</pallas_src>

<mosaic_0001>
module attributes {stable_mosaic.version = 11 : i64} {
  func.func @_dwcorr_kernel(%arg0: i32, %arg1: i32, %arg2: memref<8x8x64xf32, #tpu.memory_space<vmem>>, %arg3: memref<16x16x64xf32, #tpu.memory_space<vmem>>, %arg4: memref<3x9x64xf32, #tpu.memory_space<vmem>>) attributes {dimension_semantics = [#tpu.dimension_semantics<parallel>, #tpu.dimension_semantics<parallel>], iteration_bounds = array<i64: 1, 3>, scalar_prefetch = 0 : i64, scratch_operands = 0 : i64, tpu.core_type = #tpu.core_type<tc>, window_params = [{transform_indices = @transform_0, window_bounds = array<i64: 8, 8, 64>}, {transform_indices = @transform_1, window_bounds = array<i64: 16, 16, 64>}, {transform_indices = @transform_2, window_bounds = array<i64: 3, 9, 64>}]} {
    %c3_i32 = arith.constant 3 : i32
    %0 = arith.muli %arg1, %c3_i32 : i32
    %cst = arith.constant 0.000000e+00 : f32
    %1 = vector.broadcast %cst : f32 to vector<3x9x64xf32>
    %c0_i32 = arith.constant 0 : i32
    %2 = arith.index_cast %c0_i32 : i32 to index
    %c0 = arith.constant 0 : index
    %c0_0 = arith.constant 0 : index
    %3 = vector.load %arg2[%2, %c0, %c0_0] : memref<8x8x64xf32, #tpu.memory_space<vmem>>, vector<1x1x64xf32>
    %4 = arith.addi %0, %c0_i32 : i32
    %5 = arith.index_cast %4 : i32 to index
    %c0_1 = arith.constant 0 : index
    %c0_2 = arith.constant 0 : index
    %6 = vector.load %arg3[%5, %c0_1, %c0_2] : memref<16x16x64xf32, #tpu.memory_space<vmem>>, vector<3x9x64xf32>
    %7 = vector.broadcast %3 : vector<1x1x64xf32> to vector<3x9x64xf32>
    %8 = arith.mulf %6, %7 : vector<3x9x64xf32>
    %9 = arith.addf %1, %8 : vector<3x9x64xf32>
    %10 = arith.index_cast %c0_i32 : i32 to index
    %c1 = arith.constant 1 : index
    %c0_3 = arith.constant 0 : index
    %11 = vector.load %arg2[%10, %c1, %c0_3] : memref<8x8x64xf32, #tpu.memory_space<vmem>>, vector<1x1x64xf32>
    %12 = arith.addi %0, %c0_i32 : i32
    %13 = arith.index_cast %12 : i32 to index
    %c1_4 = arith.constant 1 : index
    %c0_5 = arith.constant 0 : index
    %14 = vector.load %arg3[%13, %c1_4, %c0_5] : memref<16x16x64xf32, #tpu.memory_space<vmem>>, vector<3x9x64xf32>
    %15 = vector.broadcast %11 : vector<1x1x64xf32> to vector<3x9x64xf32>
    %16 = arith.mulf %14, %15 : vector<3x9x64xf32>
    %17 = arith.addf %9, %16 : vector<3x9x64xf32>
    %18 = arith.index_cast %c0_i32 : i32 to index
    %c2 = arith.constant 2 : index
    %c0_6 = arith.constant 0 : index
    %19 = vector.load %arg2[%18, %c2, %c0_6] : memref<8x8x64xf32, #tpu.memory_space<vmem>>, vector<1x1x64xf32>
    %20 = arith.addi %0, %c0_i32 : i32
    %21 = arith.index_cast %20 : i32 to index
    %c2_7 = arith.constant 2 : index
    %c0_8 = arith.constant 0 : index
    %22 = vector.load %arg3[%21, %c2_7, %c0_8] : memref<16x16x64xf32, #tpu.memory_space<vmem>>, vector<3x9x64xf32>
    %23 = vector.broadcast %19 : vector<1x1x64xf32> to vector<3x9x64xf32>
    %24 = arith.mulf %22, %23 : vector<3x9x64xf32>
    %25 = arith.addf %17, %24 : vector<3x9x64xf32>
    %26 = arith.index_cast %c0_i32 : i32 to index
    %c3 = arith.constant 3 : index
    %c0_9 = arith.constant 0 : index
    %27 = vector.load %arg2[%26, %c3, %c0_9] : memref<8x8x64xf32, #tpu.memory_space<vmem>>, vector<1x1x64xf32>
    %28 = arith.addi %0, %c0_i32 : i32
    %29 = arith.index_cast %28 : i32 to index
    %c3_10 = arith.constant 3 : index
    %c0_11 = arith.constant 0 : index
    %30 = vector.load %arg3[%29, %c3_10, %c0_11] : memref<16x16x64xf32, #tpu.memory_space<vmem>>, vector<3x9x64xf32>
    %31 = vector.broadcast %27 : vector<1x1x64xf32> to vector<3x9x64xf32>
    %32 = arith.mulf %30, %31 : vector<3x9x64xf32>
    %33 = arith.addf %25, %32 : vector<3x9x64xf32>
    %34 = arith.index_cast %c0_i32 : i32 to index
    %c4 = arith.constant 4 : index
    %c0_12 = arith.constant 0 : index
    %35 = vector.load %arg2[%34, %c4, %c0_12] : memref<8x8x64xf32, #tpu.memory_space<vmem>>, vector<1x1x64xf32>
    %36 = arith.addi %0, %c0_i32 : i32
    %37 = arith.index_cast %36 : i32 to index
    %c4_13 = arith.constant 4 : index
    %c0_14 = arith.constant 0 : index
    %38 = vector.load %arg3[%37, %c4_13, %c0_14] : memref<16x16x64xf32, #tpu.memory_space<vmem>>, vector<3x9x64xf32>
    %39 = vector.broadcast %35 : vector<1x1x64xf32> to vector<3x9x64xf32>
    %40 = arith.mulf %38, %39 : vector<3x9x64xf32>
    %41 = arith.addf %33, %40 : vector<3x9x64xf32>
    %42 = arith.index_cast %c0_i32 : i32 to index
    %c5 = arith.constant 5 : index
    %c0_15 = arith.constant 0 : index
    %43 = vector.load %arg2[%42, %c5, %c0_15] : memref<8x8x64xf32, #tpu.memory_space<vmem>>, vector<1x1x64xf32>
    %44 = arith.addi %0, %c0_i32 : i32
    %45 = arith.index_cast %44 : i32 to index
    %c5_16 = arith.constant 5 : index
    %c0_17 = arith.constant 0 : index
    %46 = vector.load %arg3[%45, %c5_16, %c0_17] : memref<16x16x64xf32, #tpu.memory_space<vmem>>, vector<3x9x64xf32>
    %47 = vector.broadcast %43 : vector<1x1x64xf32> to vector<3x9x64xf32>
    %48 = arith.mulf %46, %47 : vector<3x9x64xf32>
    %49 = arith.addf %41, %48 : vector<3x9x64xf32>
    %50 = arith.index_cast %c0_i32 : i32 to index
    %c6 = arith.constant 6 : index
    %c0_18 = arith.constant 0 : index
    %51 = vector.load %arg2[%50, %c6, %c0_18] : memref<8x8x64xf32, #tpu.memory_space<vmem>>, vector<1x1x64xf32>
    %52 = arith.addi %0, %c0_i32 : i32
    %53 = arith.index_cast %52 : i32 to index
    %c6_19 = arith.constant 6 : index
    %c0_20 = arith.constant 0 : index
    %54 = vector.load %arg3[%53, %c6_19, %c0_20] : memref<16x16x64xf32, #tpu.memory_space<vmem>>, vector<3x9x64xf32>
    %55 = vector.broadcast %51 : vector<1x1x64xf32> to vector<3x9x64xf32>
    %56 = arith.mulf %54, %55 : vector<3x9x64xf32>
    %57 = arith.addf %49, %56 : vector<3x9x64xf32>
    %58 = arith.index_cast %c0_i32 : i32 to index
    %c7 = arith.constant 7 : index
    %c0_21 = arith.constant 0 : index
    %59 = vector.load %arg2[%58, %c7, %c0_21] : memref<8x8x64xf32, #tpu.memory_space<vmem>>, vector<1x1x64xf32>
    %60 = arith.addi %0, %c0_i32 : i32
    %61 = arith.index_cast %60 : i32 to index
    %c7_22 = arith.constant 7 : index
    %c0_23 = arith.constant 0 : index
    %62 = vector.load %arg3[%61, %c7_22, %c0_23] : memref<16x16x64xf32, #tpu.memory_space<vmem>>, vector<3x9x64xf32>
    %63 = vector.broadcast %59 : vector<1x1x64xf32> to vector<3x9x64xf32>
    %64 = arith.mulf %62, %63 : vector<3x9x64xf32>
    %65 = arith.addf %57, %64 : vector<3x9x64xf32>
    %c1_i32 = arith.constant 1 : i32
    %66 = arith.index_cast %c1_i32 : i32 to index
    %c0_24 = arith.constant 0 : index
    %c0_25 = arith.constant 0 : index
    %67 = vector.load %arg2[%66, %c0_24, %c0_25] : memref<8x8x64xf32, #tpu.memory_space<vmem>>, vector<1x1x64xf32>
    %68 = arith.addi %0, %c1_i32 : i32
    %69 = arith.index_cast %68 : i32 to index
    %c0_26 = arith.constant 0 : index
    %c0_27 = arith.constant 0 : index
    %70 = vector.load %arg3[%69, %c0_26, %c0_27] : memref<16x16x64xf32, #tpu.memory_space<vmem>>, vector<3x9x64xf32>
    %71 = vector.broadcast %67 : vector<1x1x64xf32> to vector<3x9x64xf32>
    %72 = arith.mulf %70, %71 : vector<3x9x64xf32>
    %73 = arith.addf %65, %72 : vector<3x9x64xf32>
    %74 = arith.index_cast %c1_i32 : i32 to index
    %c1_28 = arith.constant 1 : index
    %c0_29 = arith.constant 0 : index
    %75 = vector.load %arg2[%74, %c1_28, %c0_29] : memref<8x8x64xf32, #tpu.memory_space<vmem>>, vector<1x1x64xf32>
    %76 = arith.addi %0, %c1_i32 : i32
    %77 = arith.index_cast %76 : i32 to index
    %c1_30 = arith.constant 1 : index
    %c0_31 = arith.constant 0 : index
    %78 = vector.load %arg3[%77, %c1_30, %c0_31] : memref<16x16x64xf32, #tpu.memory_space<vmem>>, vector<3x9x64xf32>
    %79 = vector.broadcast %75 : vector<1x1x64xf32> to vector<3x9x64xf32>
    %80 = arith.mulf %78, %79 : vector<3x9x64xf32>
    %81 = arith.addf %73, %80 : vector<3x9x64xf32>
    %82 = arith.index_cast %c1_i32 : i32 to index
    %c2_32 = arith.constant 2 : index
    %c0_33 = arith.constant 0 : index
    %83 = vector.load %arg2[%82, %c2_32, %c0_33] : memref<8x8x64xf32, #tpu.memory_space<vmem>>, vector<1x1x64xf32>
    %84 = arith.addi %0, %c1_i32 : i32
    %85 = arith.index_cast %84 : i32 to index
    %c2_34 = arith.constant 2 : index
    %c0_35 = arith.constant 0 : index
    %86 = vector.load %arg3[%85, %c2_34, %c0_35] : memref<16x16x64xf32, #tpu.memory_space<vmem>>, vector<3x9x64xf32>
    %87 = vector.broadcast %83 : vector<1x1x64xf32> to vector<3x9x64xf32>
    %88 = arith.mulf %86, %87 : vector<3x9x64xf32>
    %89 = arith.addf %81, %88 : vector<3x9x64xf32>
    %90 = arith.index_cast %c1_i32 : i32 to index
    %c3_36 = arith.constant 3 : index
    %c0_37 = arith.constant 0 : index
    %91 = vector.load %arg2[%90, %c3_36, %c0_37] : memref<8x8x64xf32, #tpu.memory_space<vmem>>, vector<1x1x64xf32>
    %92 = arith.addi %0, %c1_i32 : i32
    %93 = arith.index_cast %92 : i32 to index
    %c3_38 = arith.constant 3 : index
    %c0_39 = arith.constant 0 : index
    %94 = vector.load %arg3[%93, %c3_38, %c0_39] : memref<16x16x64xf32, #tpu.memory_space<vmem>>, vector<3x9x64xf32>
    %95 = vector.broadcast %91 : vector<1x1x64xf32> to vector<3x9x64xf32>
    %96 = arith.mulf %94, %95 : vector<3x9x64xf32>
    %97 = arith.addf %89, %96 : vector<3x9x64xf32>
    %98 = arith.index_cast %c1_i32 : i32 to index
    %c4_40 = arith.constant 4 : index
    %c0_41 = arith.constant 0 : index
    %99 = vector.load %arg2[%98, %c4_40, %c0_41] : memref<8x8x64xf32, #tpu.memory_space<vmem>>, vector<1x1x64xf32>
    %100 = arith.addi %0, %c1_i32 : i32
    %101 = arith.index_cast %100 : i32 to index
    %c4_42 = arith.constant 4 : index
    %c0_43 = arith.constant 0 : index
    %102 = vector.load %arg3[%101, %c4_42, %c0_43] : memref<16x16x64xf32, #tpu.memory_space<vmem>>, vector<3x9x64xf32>
    %103 = vector.broadcast %99 : vector<1x1x64xf32> to vector<3x9x64xf32>
    %104 = arith.mulf %102, %103 : vector<3x9x64xf32>
    %105 = arith.addf %97, %104 : vector<3x9x64xf32>
    %106 = arith.index_cast %c1_i32 : i32 to index
    %c5_44 = arith.constant 5 : index
    %c0_45 = arith.constant 0 : index
    %107 = vector.load %arg2[%106, %c5_44, %c0_45] : memref<8x8x64xf32, #tpu.memory_space<vmem>>, vector<1x1x64xf32>
    %108 = arith.addi %0, %c1_i32 : i32
    %109 = arith.index_cast %108 : i32 to index
    %c5_46 = arith.constant 5 : index
    %c0_47 = arith.constant 0 : index
    %110 = vector.load %arg3[%109, %c5_46, %c0_47] : memref<16x16x64xf32, #tpu.memory_space<vmem>>, vector<3x9x64xf32>
    %111 = vector.broadcast %107 : vector<1x1x64xf32> to vector<3x9x64xf32>
    %112 = arith.mulf %110, %111 : vector<3x9x64xf32>
    %113 = arith.addf %105, %112 : vector<3x9x64xf32>
    %114 = arith.index_cast %c1_i32 : i32 to index
    %c6_48 = arith.constant 6 : index
    %c0_49 = arith.constant 0 : index
    %115 = vector.load %arg2[%114, %c6_48, %c0_49] : memref<8x8x64xf32, #tpu.memory_space<vmem>>, vector<1x1x64xf32>
    %116 = arith.addi %0, %c1_i32 : i32
    %117 = arith.index_cast %116 : i32 to index
    %c6_50 = arith.constant 6 : index
    %c0_51 = arith.constant 0 : index
    %118 = vector.load %arg3[%117, %c6_50, %c0_51] : memref<16x16x64xf32, #tpu.memory_space<vmem>>, vector<3x9x64xf32>
    %119 = vector.broadcast %115 : vector<1x1x64xf32> to vector<3x9x64xf32>
    %120 = arith.mulf %118, %119 : vector<3x9x64xf32>
    %121 = arith.addf %113, %120 : vector<3x9x64xf32>
    %122 = arith.index_cast %c1_i32 : i32 to index
    %c7_52 = arith.constant 7 : index
    %c0_53 = arith.constant 0 : index
    %123 = vector.load %arg2[%122, %c7_52, %c0_53] : memref<8x8x64xf32, #tpu.memory_space<vmem>>, vector<1x1x64xf32>
    %124 = arith.addi %0, %c1_i32 : i32
    %125 = arith.index_cast %124 : i32 to index
    %c7_54 = arith.constant 7 : index
    %c0_55 = arith.constant 0 : index
    %126 = vector.load %arg3[%125, %c7_54, %c0_55] : memref<16x16x64xf32, #tpu.memory_space<vmem>>, vector<3x9x64xf32>
    %127 = vector.broadcast %123 : vector<1x1x64xf32> to vector<3x9x64xf32>
    %128 = arith.mulf %126, %127 : vector<3x9x64xf32>
    %129 = arith.addf %121, %128 : vector<3x9x64xf32>
    %c2_i32 = arith.constant 2 : i32
    %130 = arith.index_cast %c2_i32 : i32 to index
    %c0_56 = arith.constant 0 : index
    %c0_57 = arith.constant 0 : index
    %131 = vector.load %arg2[%130, %c0_56, %c0_57] : memref<8x8x64xf32, #tpu.memory_space<vmem>>, vector<1x1x64xf32>
    %132 = arith.addi %0, %c2_i32 : i32
    %133 = arith.index_cast %132 : i32 to index
    %c0_58 = arith.constant 0 : index
    %c0_59 = arith.constant 0 : index
    %134 = vector.load %arg3[%133, %c0_58, %c0_59] : memref<16x16x64xf32, #tpu.memory_space<vmem>>, vector<3x9x64xf32>
    %135 = vector.broadcast %131 : vector<1x1x64xf32> to vector<3x9x64xf32>
    %136 = arith.mulf %134, %135 : vector<3x9x64xf32>
    %137 = arith.addf %129, %136 : vector<3x9x64xf32>
    %138 = arith.index_cast %c2_i32 : i32 to index
    %c1_60 = arith.constant 1 : index
    %c0_61 = arith.constant 0 : index
    %139 = vector.load %arg2[%138, %c1_60, %c0_61] : memref<8x8x64xf32, #tpu.memory_space<vmem>>, vector<1x1x64xf32>
    %140 = arith.addi %0, %c2_i32 : i32
    %141 = arith.index_cast %140 : i32 to index
    %c1_62 = arith.constant 1 : index
    %c0_63 = arith.constant 0 : index
    %142 = vector.load %arg3[%141, %c1_62, %c0_63] : memref<16x16x64xf32, #tpu.memory_space<vmem>>, vector<3x9x64xf32>
    %143 = vector.broadcast %139 : vector<1x1x64xf32> to vector<3x9x64xf32>
    %144 = arith.mulf %142, %143 : vector<3x9x64xf32>
    %145 = arith.addf %137, %144 : vector<3x9x64xf32>
    %146 = arith.index_cast %c2_i32 : i32 to index
    %c2_64 = arith.constant 2 : index
    %c0_65 = arith.constant 0 : index
    %147 = vector.load %arg2[%146, %c2_64, %c0_65] : memref<8x8x64xf32, #tpu.memory_space<vmem>>, vector<1x1x64xf32>
    %148 = arith.addi %0, %c2_i32 : i32
    %149 = arith.index_cast %148 : i32 to index
    %c2_66 = arith.constant 2 : index
    %c0_67 = arith.constant 0 : index
    %150 = vector.load %arg3[%149, %c2_66, %c0_67] : memref<16x16x64xf32, #tpu.memory_space<vmem>>, vector<3x9x64xf32>
    %151 = vector.broadcast %147 : vector<1x1x64xf32> to vector<3x9x64xf32>
    %152 = arith.mulf %150, %151 : vector<3x9x64xf32>
    %153 = arith.addf %145, %152 : vector<3x9x64xf32>
    %154 = arith.index_cast %c2_i32 : i32 to index
    %c3_68 = arith.constant 3 : index
    %c0_69 = arith.constant 0 : index
    %155 = vector.load %arg2[%154, %c3_68, %c0_69] : memref<8x8x64xf32, #tpu.memory_space<vmem>>, vector<1x1x64xf32>
    %156 = arith.addi %0, %c2_i32 : i32
    %157 = arith.index_cast %156 : i32 to index
    %c3_70 = arith.constant 3 : index
    %c0_71 = arith.constant 0 : index
    %158 = vector.load %arg3[%157, %c3_70, %c0_71] : memref<16x16x64xf32, #tpu.memory_space<vmem>>, vector<3x9x64xf32>
    %159 = vector.broadcast %155 : vector<1x1x64xf32> to vector<3x9x64xf32>
    %160 = arith.mulf %158, %159 : vector<3x9x64xf32>
    %161 = arith.addf %153, %160 : vector<3x9x64xf32>
    %162 = arith.index_cast %c2_i32 : i32 to index
    %c4_72 = arith.constant 4 : index
    %c0_73 = arith.constant 0 : index
    %163 = vector.load %arg2[%162, %c4_72, %c0_73] : memref<8x8x64xf32, #tpu.memory_space<vmem>>, vector<1x1x64xf32>
    %164 = arith.addi %0, %c2_i32 : i32
    %165 = arith.index_cast %164 : i32 to index
    %c4_74 = arith.constant 4 : index
    %c0_75 = arith.constant 0 : index
    %166 = vector.load %arg3[%165, %c4_74, %c0_75] : memref<16x16x64xf32, #tpu.memory_space<vmem>>, vector<3x9x64xf32>
    %167 = vector.broadcast %163 : vector<1x1x64xf32> to vector<3x9x64xf32>
    %168 = arith.mulf %166, %167 : vector<3x9x64xf32>
    %169 = arith.addf %161, %168 : vector<3x9x64xf32>
    %170 = arith.index_cast %c2_i32 : i32 to index
    %c5_76 = arith.constant 5 : index
    %c0_77 = arith.constant 0 : index
    %171 = vector.load %arg2[%170, %c5_76, %c0_77] : memref<8x8x64xf32, #tpu.memory_space<vmem>>, vector<1x1x64xf32>
    %172 = arith.addi %0, %c2_i32 : i32
    %173 = arith.index_cast %172 : i32 to index
    %c5_78 = arith.constant 5 : index
    %c0_79 = arith.constant 0 : index
    %174 = vector.load %arg3[%173, %c5_78, %c0_79] : memref<16x16x64xf32, #tpu.memory_space<vmem>>, vector<3x9x64xf32>
    %175 = vector.broadcast %171 : vector<1x1x64xf32> to vector<3x9x64xf32>
    %176 = arith.mulf %174, %175 : vector<3x9x64xf32>
    %177 = arith.addf %169, %176 : vector<3x9x64xf32>
    %178 = arith.index_cast %c2_i32 : i32 to index
    %c6_80 = arith.constant 6 : index
    %c0_81 = arith.constant 0 : index
    %179 = vector.load %arg2[%178, %c6_80, %c0_81] : memref<8x8x64xf32, #tpu.memory_space<vmem>>, vector<1x1x64xf32>
    %180 = arith.addi %0, %c2_i32 : i32
    %181 = arith.index_cast %180 : i32 to index
    %c6_82 = arith.constant 6 : index
    %c0_83 = arith.constant 0 : index
    %182 = vector.load %arg3[%181, %c6_82, %c0_83] : memref<16x16x64xf32, #tpu.memory_space<vmem>>, vector<3x9x64xf32>
    %183 = vector.broadcast %179 : vector<1x1x64xf32> to vector<3x9x64xf32>
    %184 = arith.mulf %182, %183 : vector<3x9x64xf32>
    %185 = arith.addf %177, %184 : vector<3x9x64xf32>
    %186 = arith.index_cast %c2_i32 : i32 to index
    %c7_84 = arith.constant 7 : index
    %c0_85 = arith.constant 0 : index
    %187 = vector.load %arg2[%186, %c7_84, %c0_85] : memref<8x8x64xf32, #tpu.memory_space<vmem>>, vector<1x1x64xf32>
    %188 = arith.addi %0, %c2_i32 : i32
    %189 = arith.index_cast %188 : i32 to index
    %c7_86 = arith.constant 7 : index
    %c0_87 = arith.constant 0 : index
    %190 = vector.load %arg3[%189, %c7_86, %c0_87] : memref<16x16x64xf32, #tpu.memory_space<vmem>>, vector<3x9x64xf32>
    %191 = vector.broadcast %187 : vector<1x1x64xf32> to vector<3x9x64xf32>
    %192 = arith.mulf %190, %191 : vector<3x9x64xf32>
    %193 = arith.addf %185, %192 : vector<3x9x64xf32>
    %c3_i32_88 = arith.constant 3 : i32
    %194 = arith.index_cast %c3_i32_88 : i32 to index
    %c0_89 = arith.constant 0 : index
    %c0_90 = arith.constant 0 : index
    %195 = vector.load %arg2[%194, %c0_89, %c0_90] : memref<8x8x64xf32, #tpu.memory_space<vmem>>, vector<1x1x64xf32>
    %196 = arith.addi %0, %c3_i32_88 : i32
    %197 = arith.index_cast %196 : i32 to index
    %c0_91 = arith.constant 0 : index
    %c0_92 = arith.constant 0 : index
    %198 = vector.load %arg3[%197, %c0_91, %c0_92] : memref<16x16x64xf32, #tpu.memory_space<vmem>>, vector<3x9x64xf32>
    %199 = vector.broadcast %195 : vector<1x1x64xf32> to vector<3x9x64xf32>
    %200 = arith.mulf %198, %199 : vector<3x9x64xf32>
    %201 = arith.addf %193, %200 : vector<3x9x64xf32>
    %202 = arith.index_cast %c3_i32_88 : i32 to index
    %c1_93 = arith.constant 1 : index
    %c0_94 = arith.constant 0 : index
    %203 = vector.load %arg2[%202, %c1_93, %c0_94] : memref<8x8x64xf32, #tpu.memory_space<vmem>>, vector<1x1x64xf32>
    %204 = arith.addi %0, %c3_i32_88 : i32
    %205 = arith.index_cast %204 : i32 to index
    %c1_95 = arith.constant 1 : index
    %c0_96 = arith.constant 0 : index
    %206 = vector.load %arg3[%205, %c1_95, %c0_96] : memref<16x16x64xf32, #tpu.memory_space<vmem>>, vector<3x9x64xf32>
    %207 = vector.broadcast %203 : vector<1x1x64xf32> to vector<3x9x64xf32>
    %208 = arith.mulf %206, %207 : vector<3x9x64xf32>
    %209 = arith.addf %201, %208 : vector<3x9x64xf32>
    %210 = arith.index_cast %c3_i32_88 : i32 to index
    %c2_97 = arith.constant 2 : index
    %c0_98 = arith.constant 0 : index
    %211 = vector.load %arg2[%210, %c2_97, %c0_98] : memref<8x8x64xf32, #tpu.memory_space<vmem>>, vector<1x1x64xf32>
    %212 = arith.addi %0, %c3_i32_88 : i32
    %213 = arith.index_cast %212 : i32 to index
    %c2_99 = arith.constant 2 : index
    %c0_100 = arith.constant 0 : index
    %214 = vector.load %arg3[%213, %c2_99, %c0_100] : memref<16x16x64xf32, #tpu.memory_space<vmem>>, vector<3x9x64xf32>
    %215 = vector.broadcast %211 : vector<1x1x64xf32> to vector<3x9x64xf32>
    %216 = arith.mulf %214, %215 : vector<3x9x64xf32>
    %217 = arith.addf %209, %216 : vector<3x9x64xf32>
    %218 = arith.index_cast %c3_i32_88 : i32 to index
    %c3_101 = arith.constant 3 : index
    %c0_102 = arith.constant 0 : index
    %219 = vector.load %arg2[%218, %c3_101, %c0_102] : memref<8x8x64xf32, #tpu.memory_space<vmem>>, vector<1x1x64xf32>
    %220 = arith.addi %0, %c3_i32_88 : i32
    %221 = arith.index_cast %220 : i32 to index
    %c3_103 = arith.constant 3 : index
    %c0_104 = arith.constant 0 : index
    %222 = vector.load %arg3[%221, %c3_103, %c0_104] : memref<16x16x64xf32, #tpu.memory_space<vmem>>, vector<3x9x64xf32>
    %223 = vector.broadcast %219 : vector<1x1x64xf32> to vector<3x9x64xf32>
    %224 = arith.mulf %222, %223 : vector<3x9x64xf32>
    %225 = arith.addf %217, %224 : vector<3x9x64xf32>
    %226 = arith.index_cast %c3_i32_88 : i32 to index
    %c4_105 = arith.constant 4 : index
    %c0_106 = arith.constant 0 : index
    %227 = vector.load %arg2[%226, %c4_105, %c0_106] : memref<8x8x64xf32, #tpu.memory_space<vmem>>, vector<1x1x64xf32>
    %228 = arith.addi %0, %c3_i32_88 : i32
    %229 = arith.index_cast %228 : i32 to index
    %c4_107 = arith.constant 4 : index
    %c0_108 = arith.constant 0 : index
    %230 = vector.load %arg3[%229, %c4_107, %c0_108] : memref<16x16x64xf32, #tpu.memory_space<vmem>>, vector<3x9x64xf32>
    %231 = vector.broadcast %227 : vector<1x1x64xf32> to vector<3x9x64xf32>
    %232 = arith.mulf %230, %231 : vector<3x9x64xf32>
    %233 = arith.addf %225, %232 : vector<3x9x64xf32>
    %234 = arith.index_cast %c3_i32_88 : i32 to index
    %c5_109 = arith.constant 5 : index
    %c0_110 = arith.constant 0 : index
    %235 = vector.load %arg2[%234, %c5_109, %c0_110] : memref<8x8x64xf32, #tpu.memory_space<vmem>>, vector<1x1x64xf32>
    %236 = arith.addi %0, %c3_i32_88 : i32
    %237 = arith.index_cast %236 : i32 to index
    %c5_111 = arith.constant 5 : index
    %c0_112 = arith.constant 0 : index
    %238 = vector.load %arg3[%237, %c5_111, %c0_112] : memref<16x16x64xf32, #tpu.memory_space<vmem>>, vector<3x9x64xf32>
    %239 = vector.broadcast %235 : vector<1x1x64xf32> to vector<3x9x64xf32>
    %240 = arith.mulf %238, %239 : vector<3x9x64xf32>
    %241 = arith.addf %233, %240 : vector<3x9x64xf32>
    %242 = arith.index_cast %c3_i32_88 : i32 to index
    %c6_113 = arith.constant 6 : index
    %c0_114 = arith.constant 0 : index
    %243 = vector.load %arg2[%242, %c6_113, %c0_114] : memref<8x8x64xf32, #tpu.memory_space<vmem>>, vector<1x1x64xf32>
    %244 = arith.addi %0, %c3_i32_88 : i32
    %245 = arith.index_cast %244 : i32 to index
    %c6_115 = arith.constant 6 : index
    %c0_116 = arith.constant 0 : index
    %246 = vector.load %arg3[%245, %c6_115, %c0_116] : memref<16x16x64xf32, #tpu.memory_space<vmem>>, vector<3x9x64xf32>
    %247 = vector.broadcast %243 : vector<1x1x64xf32> to vector<3x9x64xf32>
    %248 = arith.mulf %246, %247 : vector<3x9x64xf32>
    %249 = arith.addf %241, %248 : vector<3x9x64xf32>
    %250 = arith.index_cast %c3_i32_88 : i32 to index
    %c7_117 = arith.constant 7 : index
    %c0_118 = arith.constant 0 : index
    %251 = vector.load %arg2[%250, %c7_117, %c0_118] : memref<8x8x64xf32, #tpu.memory_space<vmem>>, vector<1x1x64xf32>
    %252 = arith.addi %0, %c3_i32_88 : i32
    %253 = arith.index_cast %252 : i32 to index
    %c7_119 = arith.constant 7 : index
    %c0_120 = arith.constant 0 : index
    %254 = vector.load %arg3[%253, %c7_119, %c0_120] : memref<16x16x64xf32, #tpu.memory_space<vmem>>, vector<3x9x64xf32>
    %255 = vector.broadcast %251 : vector<1x1x64xf32> to vector<3x9x64xf32>
    %256 = arith.mulf %254, %255 : vector<3x9x64xf32>
    %257 = arith.addf %249, %256 : vector<3x9x64xf32>
    %c4_i32 = arith.constant 4 : i32
    %258 = arith.index_cast %c4_i32 : i32 to index
    %c0_121 = arith.constant 0 : index
    %c0_122 = arith.constant 0 : index
    %259 = vector.load %arg2[%258, %c0_121, %c0_122] : memref<8x8x64xf32, #tpu.memory_space<vmem>>, vector<1x1x64xf32>
    %260 = arith.addi %0, %c4_i32 : i32
    %261 = arith.index_cast %260 : i32 to index
    %c0_123 = arith.constant 0 : index
    %c0_124 = arith.constant 0 : index
    %262 = vector.load %arg3[%261, %c0_123, %c0_124] : memref<16x16x64xf32, #tpu.memory_space<vmem>>, vector<3x9x64xf32>
    %263 = vector.broadcast %259 : vector<1x1x64xf32> to vector<3x9x64xf32>
    %264 = arith.mulf %262, %263 : vector<3x9x64xf32>
    %265 = arith.addf %257, %264 : vector<3x9x64xf32>
    %266 = arith.index_cast %c4_i32 : i32 to index
    %c1_125 = arith.constant 1 : index
    %c0_126 = arith.constant 0 : index
    %267 = vector.load %arg2[%266, %c1_125, %c0_126] : memref<8x8x64xf32, #tpu.memory_space<vmem>>, vector<1x1x64xf32>
    %268 = arith.addi %0, %c4_i32 : i32
    %269 = arith.index_cast %268 : i32 to index
    %c1_127 = arith.constant 1 : index
    %c0_128 = arith.constant 0 : index
    %270 = vector.load %arg3[%269, %c1_127, %c0_128] : memref<16x16x64xf32, #tpu.memory_space<vmem>>, vector<3x9x64xf32>
    %271 = vector.broadcast %267 : vector<1x1x64xf32> to vector<3x9x64xf32>
    %272 = arith.mulf %270, %271 : vector<3x9x64xf32>
    %273 = arith.addf %265, %272 : vector<3x9x64xf32>
    %274 = arith.index_cast %c4_i32 : i32 to index
    %c2_129 = arith.constant 2 : index
    %c0_130 = arith.constant 0 : index
    %275 = vector.load %arg2[%274, %c2_129, %c0_130] : memref<8x8x64xf32, #tpu.memory_space<vmem>>, vector<1x1x64xf32>
    %276 = arith.addi %0, %c4_i32 : i32
    %277 = arith.index_cast %276 : i32 to index
    %c2_131 = arith.constant 2 : index
    %c0_132 = arith.constant 0 : index
    %278 = vector.load %arg3[%277, %c2_131, %c0_132] : memref<16x16x64xf32, #tpu.memory_space<vmem>>, vector<3x9x64xf32>
    %279 = vector.broadcast %275 : vector<1x1x64xf32> to vector<3x9x64xf32>
    %280 = arith.mulf %278, %279 : vector<3x9x64xf32>
    %281 = arith.addf %273, %280 : vector<3x9x64xf32>
    %282 = arith.index_cast %c4_i32 : i32 to index
    %c3_133 = arith.constant 3 : index
    %c0_134 = arith.constant 0 : index
    %283 = vector.load %arg2[%282, %c3_133, %c0_134] : memref<8x8x64xf32, #tpu.memory_space<vmem>>, vector<1x1x64xf32>
    %284 = arith.addi %0, %c4_i32 : i32
    %285 = arith.index_cast %284 : i32 to index
    %c3_135 = arith.constant 3 : index
    %c0_136 = arith.constant 0 : index
    %286 = vector.load %arg3[%285, %c3_135, %c0_136] : memref<16x16x64xf32, #tpu.memory_space<vmem>>, vector<3x9x64xf32>
    %287 = vector.broadcast %283 : vector<1x1x64xf32> to vector<3x9x64xf32>
    %288 = arith.mulf %286, %287 : vector<3x9x64xf32>
    %289 = arith.addf %281, %288 : vector<3x9x64xf32>
    %290 = arith.index_cast %c4_i32 : i32 to index
    %c4_137 = arith.constant 4 : index
    %c0_138 = arith.constant 0 : index
    %291 = vector.load %arg2[%290, %c4_137, %c0_138] : memref<8x8x64xf32, #tpu.memory_space<vmem>>, vector<1x1x64xf32>
    %292 = arith.addi %0, %c4_i32 : i32
    %293 = arith.index_cast %292 : i32 to index
    %c4_139 = arith.constant 4 : index
    %c0_140 = arith.constant 0 : index
    %294 = vector.load %arg3[%293, %c4_139, %c0_140] : memref<16x16x64xf32, #tpu.memory_space<vmem>>, vector<3x9x64xf32>
    %295 = vector.broadcast %291 : vector<1x1x64xf32> to vector<3x9x64xf32>
    %296 = arith.mulf %294, %295 : vector<3x9x64xf32>
    %297 = arith.addf %289, %296 : vector<3x9x64xf32>
    %298 = arith.index_cast %c4_i32 : i32 to index
    %c5_141 = arith.constant 5 : index
    %c0_142 = arith.constant 0 : index
    %299 = vector.load %arg2[%298, %c5_141, %c0_142] : memref<8x8x64xf32, #tpu.memory_space<vmem>>, vector<1x1x64xf32>
    %300 = arith.addi %0, %c4_i32 : i32
    %301 = arith.index_cast %300 : i32 to index
    %c5_143 = arith.constant 5 : index
    %c0_144 = arith.constant 0 : index
    %302 = vector.load %arg3[%301, %c5_143, %c0_144] : memref<16x16x64xf32, #tpu.memory_space<vmem>>, vector<3x9x64xf32>
    %303 = vector.broadcast %299 : vector<1x1x64xf32> to vector<3x9x64xf32>
    %304 = arith.mulf %302, %303 : vector<3x9x64xf32>
    %305 = arith.addf %297, %304 : vector<3x9x64xf32>
    %306 = arith.index_cast %c4_i32 : i32 to index
    %c6_145 = arith.constant 6 : index
    %c0_146 = arith.constant 0 : index
    %307 = vector.load %arg2[%306, %c6_145, %c0_146] : memref<8x8x64xf32, #tpu.memory_space<vmem>>, vector<1x1x64xf32>
    %308 = arith.addi %0, %c4_i32 : i32
    %309 = arith.index_cast %308 : i32 to index
    %c6_147 = arith.constant 6 : index
    %c0_148 = arith.constant 0 : index
    %310 = vector.load %arg3[%309, %c6_147, %c0_148] : memref<16x16x64xf32, #tpu.memory_space<vmem>>, vector<3x9x64xf32>
    %311 = vector.broadcast %307 : vector<1x1x64xf32> to vector<3x9x64xf32>
    %312 = arith.mulf %310, %311 : vector<3x9x64xf32>
    %313 = arith.addf %305, %312 : vector<3x9x64xf32>
    %314 = arith.index_cast %c4_i32 : i32 to index
    %c7_149 = arith.constant 7 : index
    %c0_150 = arith.constant 0 : index
    %315 = vector.load %arg2[%314, %c7_149, %c0_150] : memref<8x8x64xf32, #tpu.memory_space<vmem>>, vector<1x1x64xf32>
    %316 = arith.addi %0, %c4_i32 : i32
    %317 = arith.index_cast %316 : i32 to index
    %c7_151 = arith.constant 7 : index
    %c0_152 = arith.constant 0 : index
    %318 = vector.load %arg3[%317, %c7_151, %c0_152] : memref<16x16x64xf32, #tpu.memory_space<vmem>>, vector<3x9x64xf32>
    %319 = vector.broadcast %315 : vector<1x1x64xf32> to vector<3x9x64xf32>
    %320 = arith.mulf %318, %319 : vector<3x9x64xf32>
    %321 = arith.addf %313, %320 : vector<3x9x64xf32>
    %c5_i32 = arith.constant 5 : i32
    %322 = arith.index_cast %c5_i32 : i32 to index
    %c0_153 = arith.constant 0 : index
    %c0_154 = arith.constant 0 : index
    %323 = vector.load %arg2[%322, %c0_153, %c0_154] : memref<8x8x64xf32, #tpu.memory_space<vmem>>, vector<1x1x64xf32>
    %324 = arith.addi %0, %c5_i32 : i32
    %325 = arith.index_cast %324 : i32 to index
    %c0_155 = arith.constant 0 : index
    %c0_156 = arith.constant 0 : index
    %326 = vector.load %arg3[%325, %c0_155, %c0_156] : memref<16x16x64xf32, #tpu.memory_space<vmem>>, vector<3x9x64xf32>
    %327 = vector.broadcast %323 : vector<1x1x64xf32> to vector<3x9x64xf32>
    %328 = arith.mulf %326, %327 : vector<3x9x64xf32>
    %329 = arith.addf %321, %328 : vector<3x9x64xf32>
    %330 = arith.index_cast %c5_i32 : i32 to index
    %c1_157 = arith.constant 1 : index
    %c0_158 = arith.constant 0 : index
    %331 = vector.load %arg2[%330, %c1_157, %c0_158] : memref<8x8x64xf32, #tpu.memory_space<vmem>>, vector<1x1x64xf32>
    %332 = arith.addi %0, %c5_i32 : i32
    %333 = arith.index_cast %332 : i32 to index
    %c1_159 = arith.constant 1 : index
    %c0_160 = arith.constant 0 : index
    %334 = vector.load %arg3[%333, %c1_159, %c0_160] : memref<16x16x64xf32, #tpu.memory_space<vmem>>, vector<3x9x64xf32>
    %335 = vector.broadcast %331 : vector<1x1x64xf32> to vector<3x9x64xf32>
    %336 = arith.mulf %334, %335 : vector<3x9x64xf32>
    %337 = arith.addf %329, %336 : vector<3x9x64xf32>
    %338 = arith.index_cast %c5_i32 : i32 to index
    %c2_161 = arith.constant 2 : index
    %c0_162 = arith.constant 0 : index
    %339 = vector.load %arg2[%338, %c2_161, %c0_162] : memref<8x8x64xf32, #tpu.memory_space<vmem>>, vector<1x1x64xf32>
    %340 = arith.addi %0, %c5_i32 : i32
    %341 = arith.index_cast %340 : i32 to index
    %c2_163 = arith.constant 2 : index
    %c0_164 = arith.constant 0 : index
    %342 = vector.load %arg3[%341, %c2_163, %c0_164] : memref<16x16x64xf32, #tpu.memory_space<vmem>>, vector<3x9x64xf32>
    %343 = vector.broadcast %339 : vector<1x1x64xf32> to vector<3x9x64xf32>
    %344 = arith.mulf %342, %343 : vector<3x9x64xf32>
    %345 = arith.addf %337, %344 : vector<3x9x64xf32>
    %346 = arith.index_cast %c5_i32 : i32 to index
    %c3_165 = arith.constant 3 : index
    %c0_166 = arith.constant 0 : index
    %347 = vector.load %arg2[%346, %c3_165, %c0_166] : memref<8x8x64xf32, #tpu.memory_space<vmem>>, vector<1x1x64xf32>
    %348 = arith.addi %0, %c5_i32 : i32
    %349 = arith.index_cast %348 : i32 to index
    %c3_167 = arith.constant 3 : index
    %c0_168 = arith.constant 0 : index
    %350 = vector.load %arg3[%349, %c3_167, %c0_168] : memref<16x16x64xf32, #tpu.memory_space<vmem>>, vector<3x9x64xf32>
    %351 = vector.broadcast %347 : vector<1x1x64xf32> to vector<3x9x64xf32>
    %352 = arith.mulf %350, %351 : vector<3x9x64xf32>
    %353 = arith.addf %345, %352 : vector<3x9x64xf32>
    %354 = arith.index_cast %c5_i32 : i32 to index
    %c4_169 = arith.constant 4 : index
    %c0_170 = arith.constant 0 : index
    %355 = vector.load %arg2[%354, %c4_169, %c0_170] : memref<8x8x64xf32, #tpu.memory_space<vmem>>, vector<1x1x64xf32>
    %356 = arith.addi %0, %c5_i32 : i32
    %357 = arith.index_cast %356 : i32 to index
    %c4_171 = arith.constant 4 : index
    %c0_172 = arith.constant 0 : index
    %358 = vector.load %arg3[%357, %c4_171, %c0_172] : memref<16x16x64xf32, #tpu.memory_space<vmem>>, vector<3x9x64xf32>
    %359 = vector.broadcast %355 : vector<1x1x64xf32> to vector<3x9x64xf32>
    %360 = arith.mulf %358, %359 : vector<3x9x64xf32>
    %361 = arith.addf %353, %360 : vector<3x9x64xf32>
    %362 = arith.index_cast %c5_i32 : i32 to index
    %c5_173 = arith.constant 5 : index
    %c0_174 = arith.constant 0 : index
    %363 = vector.load %arg2[%362, %c5_173, %c0_174] : memref<8x8x64xf32, #tpu.memory_space<vmem>>, vector<1x1x64xf32>
    %364 = arith.addi %0, %c5_i32 : i32
    %365 = arith.index_cast %364 : i32 to index
    %c5_175 = arith.constant 5 : index
    %c0_176 = arith.constant 0 : index
    %366 = vector.load %arg3[%365, %c5_175, %c0_176] : memref<16x16x64xf32, #tpu.memory_space<vmem>>, vector<3x9x64xf32>
    %367 = vector.broadcast %363 : vector<1x1x64xf32> to vector<3x9x64xf32>
    %368 = arith.mulf %366, %367 : vector<3x9x64xf32>
    %369 = arith.addf %361, %368 : vector<3x9x64xf32>
    %370 = arith.index_cast %c5_i32 : i32 to index
    %c6_177 = arith.constant 6 : index
    %c0_178 = arith.constant 0 : index
    %371 = vector.load %arg2[%370, %c6_177, %c0_178] : memref<8x8x64xf32, #tpu.memory_space<vmem>>, vector<1x1x64xf32>
    %372 = arith.addi %0, %c5_i32 : i32
    %373 = arith.index_cast %372 : i32 to index
    %c6_179 = arith.constant 6 : index
    %c0_180 = arith.constant 0 : index
    %374 = vector.load %arg3[%373, %c6_179, %c0_180] : memref<16x16x64xf32, #tpu.memory_space<vmem>>, vector<3x9x64xf32>
    %375 = vector.broadcast %371 : vector<1x1x64xf32> to vector<3x9x64xf32>
    %376 = arith.mulf %374, %375 : vector<3x9x64xf32>
    %377 = arith.addf %369, %376 : vector<3x9x64xf32>
    %378 = arith.index_cast %c5_i32 : i32 to index
    %c7_181 = arith.constant 7 : index
    %c0_182 = arith.constant 0 : index
    %379 = vector.load %arg2[%378, %c7_181, %c0_182] : memref<8x8x64xf32, #tpu.memory_space<vmem>>, vector<1x1x64xf32>
    %380 = arith.addi %0, %c5_i32 : i32
    %381 = arith.index_cast %380 : i32 to index
    %c7_183 = arith.constant 7 : index
    %c0_184 = arith.constant 0 : index
    %382 = vector.load %arg3[%381, %c7_183, %c0_184] : memref<16x16x64xf32, #tpu.memory_space<vmem>>, vector<3x9x64xf32>
    %383 = vector.broadcast %379 : vector<1x1x64xf32> to vector<3x9x64xf32>
    %384 = arith.mulf %382, %383 : vector<3x9x64xf32>
    %385 = arith.addf %377, %384 : vector<3x9x64xf32>
    %c6_i32 = arith.constant 6 : i32
    %386 = arith.index_cast %c6_i32 : i32 to index
    %c0_185 = arith.constant 0 : index
    %c0_186 = arith.constant 0 : index
    %387 = vector.load %arg2[%386, %c0_185, %c0_186] : memref<8x8x64xf32, #tpu.memory_space<vmem>>, vector<1x1x64xf32>
    %388 = arith.addi %0, %c6_i32 : i32
    %389 = arith.index_cast %388 : i32 to index
    %c0_187 = arith.constant 0 : index
    %c0_188 = arith.constant 0 : index
    %390 = vector.load %arg3[%389, %c0_187, %c0_188] : memref<16x16x64xf32, #tpu.memory_space<vmem>>, vector<3x9x64xf32>
    %391 = vector.broadcast %387 : vector<1x1x64xf32> to vector<3x9x64xf32>
    %392 = arith.mulf %390, %391 : vector<3x9x64xf32>
    %393 = arith.addf %385, %392 : vector<3x9x64xf32>
    %394 = arith.index_cast %c6_i32 : i32 to index
    %c1_189 = arith.constant 1 : index
    %c0_190 = arith.constant 0 : index
    %395 = vector.load %arg2[%394, %c1_189, %c0_190] : memref<8x8x64xf32, #tpu.memory_space<vmem>>, vector<1x1x64xf32>
    %396 = arith.addi %0, %c6_i32 : i32
    %397 = arith.index_cast %396 : i32 to index
    %c1_191 = arith.constant 1 : index
    %c0_192 = arith.constant 0 : index
    %398 = vector.load %arg3[%397, %c1_191, %c0_192] : memref<16x16x64xf32, #tpu.memory_space<vmem>>, vector<3x9x64xf32>
    %399 = vector.broadcast %395 : vector<1x1x64xf32> to vector<3x9x64xf32>
    %400 = arith.mulf %398, %399 : vector<3x9x64xf32>
    %401 = arith.addf %393, %400 : vector<3x9x64xf32>
    %402 = arith.index_cast %c6_i32 : i32 to index
    %c2_193 = arith.constant 2 : index
    %c0_194 = arith.constant 0 : index
    %403 = vector.load %arg2[%402, %c2_193, %c0_194] : memref<8x8x64xf32, #tpu.memory_space<vmem>>, vector<1x1x64xf32>
    %404 = arith.addi %0, %c6_i32 : i32
    %405 = arith.index_cast %404 : i32 to index
    %c2_195 = arith.constant 2 : index
    %c0_196 = arith.constant 0 : index
    %406 = vector.load %arg3[%405, %c2_195, %c0_196] : memref<16x16x64xf32, #tpu.memory_space<vmem>>, vector<3x9x64xf32>
    %407 = vector.broadcast %403 : vector<1x1x64xf32> to vector<3x9x64xf32>
    %408 = arith.mulf %406, %407 : vector<3x9x64xf32>
    %409 = arith.addf %401, %408 : vector<3x9x64xf32>
    %410 = arith.index_cast %c6_i32 : i32 to index
    %c3_197 = arith.constant 3 : index
    %c0_198 = arith.constant 0 : index
    %411 = vector.load %arg2[%410, %c3_197, %c0_198] : memref<8x8x64xf32, #tpu.memory_space<vmem>>, vector<1x1x64xf32>
    %412 = arith.addi %0, %c6_i32 : i32
    %413 = arith.index_cast %412 : i32 to index
    %c3_199 = arith.constant 3 : index
    %c0_200 = arith.constant 0 : index
    %414 = vector.load %arg3[%413, %c3_199, %c0_200] : memref<16x16x64xf32, #tpu.memory_space<vmem>>, vector<3x9x64xf32>
    %415 = vector.broadcast %411 : vector<1x1x64xf32> to vector<3x9x64xf32>
    %416 = arith.mulf %414, %415 : vector<3x9x64xf32>
    %417 = arith.addf %409, %416 : vector<3x9x64xf32>
    %418 = arith.index_cast %c6_i32 : i32 to index
    %c4_201 = arith.constant 4 : index
    %c0_202 = arith.constant 0 : index
    %419 = vector.load %arg2[%418, %c4_201, %c0_202] : memref<8x8x64xf32, #tpu.memory_space<vmem>>, vector<1x1x64xf32>
    %420 = arith.addi %0, %c6_i32 : i32
    %421 = arith.index_cast %420 : i32 to index
    %c4_203 = arith.constant 4 : index
    %c0_204 = arith.constant 0 : index
    %422 = vector.load %arg3[%421, %c4_203, %c0_204] : memref<16x16x64xf32, #tpu.memory_space<vmem>>, vector<3x9x64xf32>
    %423 = vector.broadcast %419 : vector<1x1x64xf32> to vector<3x9x64xf32>
    %424 = arith.mulf %422, %423 : vector<3x9x64xf32>
    %425 = arith.addf %417, %424 : vector<3x9x64xf32>
    %426 = arith.index_cast %c6_i32 : i32 to index
    %c5_205 = arith.constant 5 : index
    %c0_206 = arith.constant 0 : index
    %427 = vector.load %arg2[%426, %c5_205, %c0_206] : memref<8x8x64xf32, #tpu.memory_space<vmem>>, vector<1x1x64xf32>
    %428 = arith.addi %0, %c6_i32 : i32
    %429 = arith.index_cast %428 : i32 to index
    %c5_207 = arith.constant 5 : index
    %c0_208 = arith.constant 0 : index
    %430 = vector.load %arg3[%429, %c5_207, %c0_208] : memref<16x16x64xf32, #tpu.memory_space<vmem>>, vector<3x9x64xf32>
    %431 = vector.broadcast %427 : vector<1x1x64xf32> to vector<3x9x64xf32>
    %432 = arith.mulf %430, %431 : vector<3x9x64xf32>
    %433 = arith.addf %425, %432 : vector<3x9x64xf32>
    %434 = arith.index_cast %c6_i32 : i32 to index
    %c6_209 = arith.constant 6 : index
    %c0_210 = arith.constant 0 : index
    %435 = vector.load %arg2[%434, %c6_209, %c0_210] : memref<8x8x64xf32, #tpu.memory_space<vmem>>, vector<1x1x64xf32>
    %436 = arith.addi %0, %c6_i32 : i32
    %437 = arith.index_cast %436 : i32 to index
    %c6_211 = arith.constant 6 : index
    %c0_212 = arith.constant 0 : index
    %438 = vector.load %arg3[%437, %c6_211, %c0_212] : memref<16x16x64xf32, #tpu.memory_space<vmem>>, vector<3x9x64xf32>
    %439 = vector.broadcast %435 : vector<1x1x64xf32> to vector<3x9x64xf32>
    %440 = arith.mulf %438, %439 : vector<3x9x64xf32>
    %441 = arith.addf %433, %440 : vector<3x9x64xf32>
    %442 = arith.index_cast %c6_i32 : i32 to index
    %c7_213 = arith.constant 7 : index
    %c0_214 = arith.constant 0 : index
    %443 = vector.load %arg2[%442, %c7_213, %c0_214] : memref<8x8x64xf32, #tpu.memory_space<vmem>>, vector<1x1x64xf32>
    %444 = arith.addi %0, %c6_i32 : i32
    %445 = arith.index_cast %444 : i32 to index
    %c7_215 = arith.constant 7 : index
    %c0_216 = arith.constant 0 : index
    %446 = vector.load %arg3[%445, %c7_215, %c0_216] : memref<16x16x64xf32, #tpu.memory_space<vmem>>, vector<3x9x64xf32>
    %447 = vector.broadcast %443 : vector<1x1x64xf32> to vector<3x9x64xf32>
    %448 = arith.mulf %446, %447 : vector<3x9x64xf32>
    %449 = arith.addf %441, %448 : vector<3x9x64xf32>
    %c7_i32 = arith.constant 7 : i32
    %450 = arith.index_cast %c7_i32 : i32 to index
    %c0_217 = arith.constant 0 : index
    %c0_218 = arith.constant 0 : index
    %451 = vector.load %arg2[%450, %c0_217, %c0_218] : memref<8x8x64xf32, #tpu.memory_space<vmem>>, vector<1x1x64xf32>
    %452 = arith.addi %0, %c7_i32 : i32
    %453 = arith.index_cast %452 : i32 to index
    %c0_219 = arith.constant 0 : index
    %c0_220 = arith.constant 0 : index
    %454 = vector.load %arg3[%453, %c0_219, %c0_220] : memref<16x16x64xf32, #tpu.memory_space<vmem>>, vector<3x9x64xf32>
    %455 = vector.broadcast %451 : vector<1x1x64xf32> to vector<3x9x64xf32>
    %456 = arith.mulf %454, %455 : vector<3x9x64xf32>
    %457 = arith.addf %449, %456 : vector<3x9x64xf32>
    %458 = arith.index_cast %c7_i32 : i32 to index
    %c1_221 = arith.constant 1 : index
    %c0_222 = arith.constant 0 : index
    %459 = vector.load %arg2[%458, %c1_221, %c0_222] : memref<8x8x64xf32, #tpu.memory_space<vmem>>, vector<1x1x64xf32>
    %460 = arith.addi %0, %c7_i32 : i32
    %461 = arith.index_cast %460 : i32 to index
    %c1_223 = arith.constant 1 : index
    %c0_224 = arith.constant 0 : index
    %462 = vector.load %arg3[%461, %c1_223, %c0_224] : memref<16x16x64xf32, #tpu.memory_space<vmem>>, vector<3x9x64xf32>
    %463 = vector.broadcast %459 : vector<1x1x64xf32> to vector<3x9x64xf32>
    %464 = arith.mulf %462, %463 : vector<3x9x64xf32>
    %465 = arith.addf %457, %464 : vector<3x9x64xf32>
    %466 = arith.index_cast %c7_i32 : i32 to index
    %c2_225 = arith.constant 2 : index
    %c0_226 = arith.constant 0 : index
    %467 = vector.load %arg2[%466, %c2_225, %c0_226] : memref<8x8x64xf32, #tpu.memory_space<vmem>>, vector<1x1x64xf32>
    %468 = arith.addi %0, %c7_i32 : i32
    %469 = arith.index_cast %468 : i32 to index
    %c2_227 = arith.constant 2 : index
    %c0_228 = arith.constant 0 : index
    %470 = vector.load %arg3[%469, %c2_227, %c0_228] : memref<16x16x64xf32, #tpu.memory_space<vmem>>, vector<3x9x64xf32>
    %471 = vector.broadcast %467 : vector<1x1x64xf32> to vector<3x9x64xf32>
    %472 = arith.mulf %470, %471 : vector<3x9x64xf32>
    %473 = arith.addf %465, %472 : vector<3x9x64xf32>
    %474 = arith.index_cast %c7_i32 : i32 to index
    %c3_229 = arith.constant 3 : index
    %c0_230 = arith.constant 0 : index
    %475 = vector.load %arg2[%474, %c3_229, %c0_230] : memref<8x8x64xf32, #tpu.memory_space<vmem>>, vector<1x1x64xf32>
    %476 = arith.addi %0, %c7_i32 : i32
    %477 = arith.index_cast %476 : i32 to index
    %c3_231 = arith.constant 3 : index
    %c0_232 = arith.constant 0 : index
    %478 = vector.load %arg3[%477, %c3_231, %c0_232] : memref<16x16x64xf32, #tpu.memory_space<vmem>>, vector<3x9x64xf32>
    %479 = vector.broadcast %475 : vector<1x1x64xf32> to vector<3x9x64xf32>
    %480 = arith.mulf %478, %479 : vector<3x9x64xf32>
    %481 = arith.addf %473, %480 : vector<3x9x64xf32>
    %482 = arith.index_cast %c7_i32 : i32 to index
    %c4_233 = arith.constant 4 : index
    %c0_234 = arith.constant 0 : index
    %483 = vector.load %arg2[%482, %c4_233, %c0_234] : memref<8x8x64xf32, #tpu.memory_space<vmem>>, vector<1x1x64xf32>
    %484 = arith.addi %0, %c7_i32 : i32
    %485 = arith.index_cast %484 : i32 to index
    %c4_235 = arith.constant 4 : index
    %c0_236 = arith.constant 0 : index
    %486 = vector.load %arg3[%485, %c4_235, %c0_236] : memref<16x16x64xf32, #tpu.memory_space<vmem>>, vector<3x9x64xf32>
    %487 = vector.broadcast %483 : vector<1x1x64xf32> to vector<3x9x64xf32>
    %488 = arith.mulf %486, %487 : vector<3x9x64xf32>
    %489 = arith.addf %481, %488 : vector<3x9x64xf32>
    %490 = arith.index_cast %c7_i32 : i32 to index
    %c5_237 = arith.constant 5 : index
    %c0_238 = arith.constant 0 : index
    %491 = vector.load %arg2[%490, %c5_237, %c0_238] : memref<8x8x64xf32, #tpu.memory_space<vmem>>, vector<1x1x64xf32>
    %492 = arith.addi %0, %c7_i32 : i32
    %493 = arith.index_cast %492 : i32 to index
    %c5_239 = arith.constant 5 : index
    %c0_240 = arith.constant 0 : index
    %494 = vector.load %arg3[%493, %c5_239, %c0_240] : memref<16x16x64xf32, #tpu.memory_space<vmem>>, vector<3x9x64xf32>
    %495 = vector.broadcast %491 : vector<1x1x64xf32> to vector<3x9x64xf32>
    %496 = arith.mulf %494, %495 : vector<3x9x64xf32>
    %497 = arith.addf %489, %496 : vector<3x9x64xf32>
    %498 = arith.index_cast %c7_i32 : i32 to index
    %c6_241 = arith.constant 6 : index
    %c0_242 = arith.constant 0 : index
    %499 = vector.load %arg2[%498, %c6_241, %c0_242] : memref<8x8x64xf32, #tpu.memory_space<vmem>>, vector<1x1x64xf32>
    %500 = arith.addi %0, %c7_i32 : i32
    %501 = arith.index_cast %500 : i32 to index
    %c6_243 = arith.constant 6 : index
    %c0_244 = arith.constant 0 : index
    %502 = vector.load %arg3[%501, %c6_243, %c0_244] : memref<16x16x64xf32, #tpu.memory_space<vmem>>, vector<3x9x64xf32>
    %503 = vector.broadcast %499 : vector<1x1x64xf32> to vector<3x9x64xf32>
    %504 = arith.mulf %502, %503 : vector<3x9x64xf32>
    %505 = arith.addf %497, %504 : vector<3x9x64xf32>
    %506 = arith.index_cast %c7_i32 : i32 to index
    %c7_245 = arith.constant 7 : index
    %c0_246 = arith.constant 0 : index
    %507 = vector.load %arg2[%506, %c7_245, %c0_246] : memref<8x8x64xf32, #tpu.memory_space<vmem>>, vector<1x1x64xf32>
    %508 = arith.addi %0, %c7_i32 : i32
    %509 = arith.index_cast %508 : i32 to index
    %c7_247 = arith.constant 7 : index
    %c0_248 = arith.constant 0 : index
    %510 = vector.load %arg3[%509, %c7_247, %c0_248] : memref<16x16x64xf32, #tpu.memory_space<vmem>>, vector<3x9x64xf32>
    %511 = vector.broadcast %507 : vector<1x1x64xf32> to vector<3x9x64xf32>
    %512 = arith.mulf %510, %511 : vector<3x9x64xf32>
    %513 = arith.addf %505, %512 : vector<3x9x64xf32>
    %c8_i32 = arith.constant 8 : i32
    %c0_249 = arith.constant 0 : index
    %c0_250 = arith.constant 0 : index
    %c0_251 = arith.constant 0 : index
    %514 = vector.load %arg4[%c0_249, %c0_250, %c0_251] : memref<3x9x64xf32, #tpu.memory_space<vmem>>, vector<3x9x64xf32>
    tpu.vector_store %arg4[%c0_249, %c0_250, %c0_251], %513 {strides = array<i32>} : memref<3x9x64xf32, #tpu.memory_space<vmem>>, vector<3x9x64xf32>,
    return
  }
  func.func @transform_0(%arg0: i32, %arg1: i32) -> (i32, i32, i32) {
    %c0_i32 = arith.constant 0 : i32
    %c0_i32_0 = arith.constant 0 : i32
    %c0_i32_1 = arith.constant 0 : i32
    return %c0_i32, %c0_i32_0, %arg0 : i32, i32, i32
  }
  func.func @transform_1(%arg0: i32, %arg1: i32) -> (i32, i32, i32) {
    %c0_i32 = arith.constant 0 : i32
    %c0_i32_0 = arith.constant 0 : i32
    %c0_i32_1 = arith.constant 0 : i32
    return %c0_i32, %c0_i32_0, %arg0 : i32, i32, i32
  }
  func.func @transform_2(%arg0: i32, %arg1: i32) -> (i32, i32, i32) {
    %c0_i32 = arith.constant 0 : i32
    %c0_i32_0 = arith.constant 0 : i32
    return %arg1, %c0_i32, %arg0 : i32, i32, i32
  }
}

</mosaic_0001>

<llo_original>
// kernel: tpu_custom_call.1
$region0: #{tpu_custom_call.1}
  #allocation0 [shape = 'u32[]', space=smem, size = 0x4, offset = 0x4, fixed_abs, tag = 'smem constant byte address 0x4 - core index']
  #allocation1 [shape = 'u32[144,128]{1,0:T(1,128)}', space=vmem, size = 0x12000, scoped, tag = 'internal scratch']
  %s0 = inlined_call_operand.hbm [shape: f32[8,8,64], index: 0, kind: input, shape index: {}]
  %s1 = inlined_call_operand.hbm [shape: f32[16,16,64], index: 1, kind: input, shape index: {}]
  %s2 = inlined_call_operand.hbm [shape: f32[9,9,64], index: 2, kind: output, shape index: {}]
  %s3 = sld [smem:[#allocation0]]
  $region49: #{tpu_custom_call.1} parent=0
    _
  %s5 = ssub.s32 1, %s3
  %s6 = scalar_select 0, %s5, %s3
  $region1: #{tpu_custom_call.1} parent=0
    #allocation2 [shape = 'u8[32768]{0}', space=vmem, size = 0x8000, scoped, tag = 'input window, operand 0, single buffered']
    #allocation3 [shape = 's32[2]{0}', space=sflag, size = 0x8, scoped, tag = 'scoped memory for tpu_custom_call.1']
    #allocation4 [shape = 's32[2]{0}', space=sflag, size = 0x8, scoped, tag = 'scoped memory for tpu_custom_call.1']
    #allocation5 [shape = 'u8[131072]{0}', space=vmem, size = 0x20000, scoped, tag = 'input window, operand 1, single buffered']
    #allocation6 [shape = 's32[1]{0}', space=sflag, size = 0x4, scoped, tag = 'scoped memory for tpu_custom_call.1']
    #allocation7 [shape = 'u8[49152]{0}', space=vmem, size = 0xc000, scoped, tag = 'output window, operand 0']
    %7 = vsyncpa [#allocation3], 0
    %8 = vsyncpa [#allocation6], 0
    %9 = vsyncpa [#allocation4], 0
    %s10 = scalar_lea.sflag [#allocation4], 1
    %11 = vsyncpa %s10, 0
    loop: start=0, step=1, limit=5
    $region2: #{tpu_custom_call.1} parent=1 // loop_pre_header
      _
    $region3: #{tpu_custom_call.1} parent=1 // loop_header
      %s13 = sphi 0, %s17
      %p14 = scmp.ge.s32.totalorder %s13, 5
      %s20 = sphi 0, %s32
      %s21 = sphi 0, %s28
      %s22 = sphi 0, %s20
      %s23 = sphi 0, %s21
      %s24 = sphi 0, %s22
      %s25 = sphi 0, %s23
      %s35 = sphi 0, %s37
      %s38 = sphi 0, %s35
      %s39 = sphi 0, %s38
      %s55 = sphi 0, %s39
      %s61 = sphi 0, %s63
      %s64 = sphi 0, %s61
      %s65 = sphi 0, %s64
      %s81 = sphi 0, %s65
      %s89 = sphi 0, %s91
      %s92 = sphi 0, %s89
      %s93 = sphi 0, %s92
      %s109 = sphi 0, %s93
    $region4: #{tpu_custom_call.1} parent=1 // loop_header_branch
      %16 = sbr.rel (%p14) target = $region8
    $region5: #{tpu_custom_call.1} parent=1 // loop_body
      %s18 = ssub.s32 %s13, 1
      %s19 = ssub.s32 %s13, 2
      %s26 = sadd.s32 1, %s21
      %p27 = scmp.ge.s32.totalorder %s26, 3
      %s28 = scalar_select %p27, 0, %s26
      %s29 = sadd.s32 1, %s20
      %s30 = scalar_select %p27, %s29, %s20
      %p31 = scmp.ge.s32.totalorder %s30, 1
      %s32 = scalar_select %p31, 0, %s30
      %s33 = ssub.s32 %s20, %s32
      %p34 = scmp.eq.s32.totalorder %s33, 0
      %s36 = sadd.s32 %s35, 1
      %s37 = scalar_select %p34, %s35, %s36
      %p40 = pneg %p34
      %p41 = scmp.eq.s32.totalorder %s13, 2
      %p42 = por %p40, %p41
      %p43 = scmp.ne.s32.totalorder %s35, %s38
      %p44 = scmp.eq.s32.totalorder %s13, 0
      %p45 = por %p43, %p44
      %p46 = scmp.ne.s32.totalorder %s35, %s38
      %p47 = scmp.eq.s32.totalorder %s18, 2
      %p48 = por %p46, %p47
      %p49 = scmp.ne.s32.totalorder %s38, %s39
      %p50 = scmp.eq.s32.totalorder %s18, 0
      %p51 = por %p49, %p50
      %p52 = scmp.ne.s32.totalorder %s38, %s39
      %p53 = scmp.eq.s32.totalorder %s19, 2
      %p54 = por %p52, %p53
      %p56 = scmp.ne.s32.totalorder %s39, %s55
      %p57 = scmp.eq.s32.totalorder %s19, 0
      %p58 = por %p56, %p57
      %s59 = ssub.s32 %s20, %s32
      %p60 = scmp.eq.s32.totalorder %s59, 0
      %s62 = sadd.s32 %s61, 1
      %s63 = scalar_select %p60, %s61, %s62
      %p66 = pneg %p60
      %p67 = scmp.eq.s32.totalorder %s13, 2
      %p68 = por %p66, %p67
      %p69 = scmp.ne.s32.totalorder %s61, %s64
      %p70 = scmp.eq.s32.totalorder %s13, 0
      %p71 = por %p69, %p70
      %p72 = scmp.ne.s32.totalorder %s61, %s64
      %p73 = scmp.eq.s32.totalorder %s18, 2
      %p74 = por %p72, %p73
      %p75 = scmp.ne.s32.totalorder %s64, %s65
      %p76 = scmp.eq.s32.totalorder %s18, 0
      %p77 = por %p75, %p76
      %p78 = scmp.ne.s32.totalorder %s64, %s65
      %p79 = scmp.eq.s32.totalorder %s19, 2
      %p80 = por %p78, %p79
      %p82 = scmp.ne.s32.totalorder %s65, %s81
      %p83 = scmp.eq.s32.totalorder %s19, 0
      %p84 = por %p82, %p83
      %s85 = ssub.s32 %s21, %s28
      %s86 = ssub.s32 %s20, %s32
      %s87 = sor.u32 %s85, %s86
      %p88 = scmp.eq.s32.totalorder %s87, 0
      %s90 = sadd.s32 %s89, 1
      %s91 = scalar_select %p88, %s89, %s90
      %p94 = pneg %p88
      %p95 = scmp.eq.s32.totalorder %s13, 2
      %p96 = por %p94, %p95
      %p97 = scmp.ne.s32.totalorder %s89, %s92
      %p98 = scmp.eq.s32.totalorder %s13, 0
      %p99 = por %p97, %p98
      %p100 = scmp.ne.s32.totalorder %s89, %s92
      %p101 = scmp.eq.s32.totalorder %s18, 2
      %p102 = por %p100, %p101
      %p103 = scmp.ne.s32.totalorder %s92, %s93
      %p104 = scmp.eq.s32.totalorder %s18, 0
      %p105 = por %p103, %p104
      %p106 = scmp.ne.s32.totalorder %s92, %s93
      %p107 = scmp.eq.s32.totalorder %s19, 2
      %p108 = por %p106, %p107
      %p110 = scmp.ne.s32.totalorder %s93, %s109
      %p111 = scmp.eq.s32.totalorder %s19, 0
      %p112 = por %p110, %p111
      %p113 = scmp.le.s32.totalorder 1, %s13
      %p114 = scmp.lt.s32.totalorder %s13, 4
      %p115 = pnand %p113, %p114
      %p116 = pneg %p115
      // Predicated region
      $region9: #{tpu_custom_call.1} parent=5 // pred_check
        _
      $region10: #{tpu_custom_call.1} parent=5 // pred_check_branch
        %118 = sbr.rel (%p115) target = $region12
      $region11: #{tpu_custom_call.1} parent=5 // pred_region
        %s119 = ssub.s32 %s13, 1
        // Predicated region
        $region13: #{tpu_custom_call.1} parent=11 // pred_check
          %p120 = pneg %p51
        $region14: #{tpu_custom_call.1} parent=11 // pred_check_branch
          %122 = sbr.rel (%p120) target = $region16
        $region15: #{tpu_custom_call.1} parent=11 // pred_region
          %s124 = ssub.s32 1024, 1024
          %125 = vsyncadd [#allocation3], %s124
          %s126 = smul.addr %s22, 128
          %s127 = scalar_lea.hbm %s0, %s126
          %s128 = sshll.u32 [#allocation2], 4
          %s129 = int_to_ptr.vmem [resolvable:$true] %s128
          %134 = dma.hbm_to_vmem [thread:$0]  %s127, 1024, %s129, [#allocation3], 128, 128, 8
        $region16: #{tpu_custom_call.1} parent=11 // pred_fallthru
          _
        // Predicated region
        $region17: #{tpu_custom_call.1} parent=11 // pred_check
          %p135 = pneg %p77
        $region18: #{tpu_custom_call.1} parent=11 // pred_check_branch
          %137 = sbr.rel (%p135) target = $region20
        $region19: #{tpu_custom_call.1} parent=11 // pred_region
          %s139 = ssub.s32 4096, 4096
          %140 = vsyncadd [#allocation6], %s139
          %s141 = smul.addr %s22, 128
          %s142 = scalar_lea.hbm %s1, %s141
          %s143 = sshll.u32 [#allocation5], 4
          %s144 = int_to_ptr.vmem [resolvable:$true] %s143
          %149 = dma.hbm_to_vmem [thread:$0]  %s142, 4096, %s144, [#allocation6], 128, 128, 8
        $region20: #{tpu_custom_call.1} parent=11 // pred_fallthru
          _
      $region12: #{tpu_custom_call.1} parent=5 // pred_fallthru
        _
      %p150 = scmp.lt.s32.totalorder %s13, 3
      // Predicated region
      $region21: #{tpu_custom_call.1} parent=5 // pred_check
        %p151 = pneg %p150
      $region22: #{tpu_custom_call.1} parent=5 // pred_check_branch
        %153 = sbr.rel (%p151) target = $region24
      $region23: #{tpu_custom_call.1} parent=5 // pred_region
        _
      $region24: #{tpu_custom_call.1} parent=5 // pred_fallthru
        _
      %p154 = scmp.le.s32.totalorder 1, %s13
      %p155 = scmp.lt.s32.totalorder %s13, 4
      %p156 = pnand %p154, %p155
      %p157 = pneg %p156
      // Predicated region
      $region25: #{tpu_custom_call.1} parent=5 // pred_check
        _
      $region26: #{tpu_custom_call.1} parent=5 // pred_check_branch
        %159 = sbr.rel (%p156) target = $region28
      $region27: #{tpu_custom_call.1} parent=5 // pred_region
        %s160 = ssub.s32 %s13, 1
        // Predicated region
        $region29: #{tpu_custom_call.1} parent=27 // pred_check
          %p161 = pneg %p51
        $region30: #{tpu_custom_call.1} parent=27 // pred_check_branch
          %163 = sbr.rel (%p161) target = $region32
        $region31: #{tpu_custom_call.1} parent=27 // pred_region
          %164 = dma.done [#allocation3], 1024
        $region32: #{tpu_custom_call.1} parent=27 // pred_fallthru
          _
        // Predicated region
        $region33: #{tpu_custom_call.1} parent=27 // pred_check
          %p165 = pneg %p77
        $region34: #{tpu_custom_call.1} parent=27 // pred_check_branch
          %167 = sbr.rel (%p165) target = $region36
        $region35: #{tpu_custom_call.1} parent=27 // pred_region
          %168 = dma.done [#allocation6], 4096
        $region36: #{tpu_custom_call.1} parent=27 // pred_fallthru
          _
        %p169 = pneg %p51
        %p170 = pneg %p48
        %p171 = pneg %p77
        %p172 = pneg %p74
        %p173 = pneg %p105
        %p174 = pneg %p102
        %s175 = sand.u32 %s92, 1
        %s176 = scalar_lea.sflag [#allocation4], %s175
        %s177 = sand.u32 %s92, 1
        %s178 = smul.addr %s177, 48
        %s179 = scalar_lea.vmem [#allocation7], %s178
        %s180 = smul.u32 3, %s23
        %s181 = smul.u32 %s23, 3
        %v182 = vld [vmem:[#allocation2] sm:$0x1]
        %s183 = smul.u32 %s181, 16
        %s184 = scalar_lea.vmem [#allocation5], %s183
        %v185 = vld [vmem:[%s184] sm:$0xff]
        %v186 = vld [vmem:[%s184 + $0x8] sm:$0x1]
        %v187 = vld [vmem:[%s184 + $0x10] sm:$0xff]
        %v188 = vld [vmem:[%s184 + $0x18] sm:$0x1]
        %v189 = vld [vmem:[%s184 + $0x20] sm:$0xff]
        %v190 = vld [vmem:[%s184 + $0x28] sm:$0x1]
        %v191 = vlaneseq
        %v192 = vshrl.u32 %v191, 7
        %v193 = vsub.s32 0, %v192
        %v194 = vrot.slane %v182, %v193
        %v195 = vmul.f32 %v185, %v194
        %v196 = vmul.f32 %v186, %v194
        %v197 = vmul.f32 %v187, %v194
        %v198 = vmul.f32 %v188, %v194
        %v199 = vmul.f32 %v189, %v194
        %v200 = vmul.f32 %v190, %v194
        %v201 = vadd.f32 %v195, 0.0
        %v202 = vadd.f32 %v196, 0.0
        %v203 = vadd.f32 %v197, 0.0
        %v204 = vadd.f32 %v198, 0.0
        %v205 = vadd.f32 %v199, 0.0
        %v206 = vadd.f32 %v200, 0.0
        %v207 = vld [vmem:[#allocation2 + $0x1] sm:$0x1]
        %v208 = vld [vmem:[%s184 + $0x1] sm:$0xff]
        %v209 = vld [vmem:[%s184 + $0x9] sm:$0x1]
        %v210 = vld [vmem:[%s184 + $0x11] sm:$0xff]
        %v211 = vld [vmem:[%s184 + $0x19] sm:$0x1]
        %v212 = vld [vmem:[%s184 + $0x21] sm:$0xff]
        %v213 = vld [vmem:[%s184 + $0x29] sm:$0x1]
        %v214 = vlaneseq
        %v215 = vshrl.u32 %v214, 7
        %v216 = vsub.s32 0, %v215
        %v217 = vrot.slane %v207, %v216
        %v218 = vmul.f32 %v208, %v217
        %v219 = vmul.f32 %v209, %v217
        %v220 = vmul.f32 %v210, %v217
        %v221 = vmul.f32 %v211, %v217
        %v222 = vmul.f32 %v212, %v217
        %v223 = vmul.f32 %v213, %v217
        %v224 = vadd.f32 %v201, %v218
        %v225 = vadd.f32 %v202, %v219
        %v226 = vadd.f32 %v203, %v220
        %v227 = vadd.f32 %v204, %v221
        %v228 = vadd.f32 %v205, %v222
        %v229 = vadd.f32 %v206, %v223
        %v230 = vld [vmem:[#allocation2 + $0x2] sm:$0x1]
        %v231 = vld [vmem:[%s184 + $0x2] sm:$0xff]
        %v232 = vld [vmem:[%s184 + $0xa] sm:$0x1]
        %v233 = vld [vmem:[%s184 + $0x12] sm:$0xff]
        %v234 = vld [vmem:[%s184 + $0x1a] sm:$0x1]
        %v235 = vld [vmem:[%s184 + $0x22] sm:$0xff]
        %v236 = vld [vmem:[%s184 + $0x2a] sm:$0x1]
        %v237 = vlaneseq
        %v238 = vshrl.u32 %v237, 7
        %v239 = vsub.s32 0, %v238
        %v240 = vrot.slane %v230, %v239
        %v241 = vmul.f32 %v231, %v240
        %v242 = vmul.f32 %v232, %v240
        %v243 = vmul.f32 %v233, %v240
        %v244 = vmul.f32 %v234, %v240
        %v245 = vmul.f32 %v235, %v240
        %v246 = vmul.f32 %v236, %v240
        %v247 = vadd.f32 %v224, %v241
        %v248 = vadd.f32 %v225, %v242
        %v249 = vadd.f32 %v226, %v243
        %v250 = vadd.f32 %v227, %v244
        %v251 = vadd.f32 %v228, %v245
        %v252 = vadd.f32 %v229, %v246
        %v253 = vld [vmem:[#allocation2 + $0x3] sm:$0x1]
        %v254 = vld [vmem:[%s184 + $0x3] sm:$0xff]
        %v255 = vld [vmem:[%s184 + $0xb] sm:$0x1]
        %v256 = vld [vmem:[%s184 + $0x13] sm:$0xff]
        %v257 = vld [vmem:[%s184 + $0x1b] sm:$0x1]
        %v258 = vld [vmem:[%s184 + $0x23] sm:$0xff]
        %v259 = vld [vmem:[%s184 + $0x2b] sm:$0x1]
        %v260 = vlaneseq
        %v261 = vshrl.u32 %v260, 7
        %v262 = vsub.s32 0, %v261
        %v263 = vrot.slane %v253, %v262
        %v264 = vmul.f32 %v254, %v263
        %v265 = vmul.f32 %v255, %v263
        %v266 = vmul.f32 %v256, %v263
        %v267 = vmul.f32 %v257, %v263
        %v268 = vmul.f32 %v258, %v263
        %v269 = vmul.f32 %v259, %v263
        %v270 = vadd.f32 %v247, %v264
        %v271 = vadd.f32 %v248, %v265
        %v272 = vadd.f32 %v249, %v266
        %v273 = vadd.f32 %v250, %v267
        %v274 = vadd.f32 %v251, %v268
        %v275 = vadd.f32 %v252, %v269
        %v276 = vld [vmem:[#allocation2 + $0x4] sm:$0x1]
        %v277 = vld [vmem:[%s184 + $0x4] sm:$0xff]
        %v278 = vld [vmem:[%s184 + $0xc] sm:$0x1]
        %v279 = vld [vmem:[%s184 + $0x14] sm:$0xff]
        %v280 = vld [vmem:[%s184 + $0x1c] sm:$0x1]
        %v281 = vld [vmem:[%s184 + $0x24] sm:$0xff]
        %v282 = vld [vmem:[%s184 + $0x2c] sm:$0x1]
        %v283 = vlaneseq
        %v284 = vshrl.u32 %v283, 7
        %v285 = vsub.s32 0, %v284
        %v286 = vrot.slane %v276, %v285
        %v287 = vmul.f32 %v277, %v286
        %v288 = vmul.f32 %v278, %v286
        %v289 = vmul.f32 %v279, %v286
        %v290 = vmul.f32 %v280, %v286
        %v291 = vmul.f32 %v281, %v286
        %v292 = vmul.f32 %v282, %v286
        %v293 = vadd.f32 %v270, %v287
        %v294 = vadd.f32 %v271, %v288
        %v295 = vadd.f32 %v272, %v289
        %v296 = vadd.f32 %v273, %v290
        %v297 = vadd.f32 %v274, %v291
        %v298 = vadd.f32 %v275, %v292
        %v299 = vld [vmem:[#allocation2 + $0x5] sm:$0x1]
        %v300 = vld [vmem:[%s184 + $0x5] sm:$0xff]
        %v301 = vld [vmem:[%s184 + $0xd] sm:$0x1]
        %v302 = vld [vmem:[%s184 + $0x15] sm:$0xff]
        %v303 = vld [vmem:[%s184 + $0x1d] sm:$0x1]
        %v304 = vld [vmem:[%s184 + $0x25] sm:$0xff]
        %v305 = vld [vmem:[%s184 + $0x2d] sm:$0x1]
        %v306 = vlaneseq
        %v307 = vshrl.u32 %v306, 7
        %v308 = vsub.s32 0, %v307
        %v309 = vrot.slane %v299, %v308
        %v310 = vmul.f32 %v300, %v309
        %v311 = vmul.f32 %v301, %v309
        %v312 = vmul.f32 %v302, %v309
        %v313 = vmul.f32 %v303, %v309
        %v314 = vmul.f32 %v304, %v309
        %v315 = vmul.f32 %v305, %v309
        %v316 = vadd.f32 %v293, %v310
        %v317 = vadd.f32 %v294, %v311
        %v318 = vadd.f32 %v295, %v312
        %v319 = vadd.f32 %v296, %v313
        %v320 = vadd.f32 %v297, %v314
        %v321 = vadd.f32 %v298, %v315
        %v322 = vld [vmem:[#allocation2 + $0x6] sm:$0x1]
        %v323 = vld [vmem:[%s184 + $0x6] sm:$0xff]
        %v324 = vld [vmem:[%s184 + $0xe] sm:$0x1]
        %v325 = vld [vmem:[%s184 + $0x16] sm:$0xff]
        %v326 = vld [vmem:[%s184 + $0x1e] sm:$0x1]
        %v327 = vld [vmem:[%s184 + $0x26] sm:$0xff]
        %v328 = vld [vmem:[%s184 + $0x2e] sm:$0x1]
        %v329 = vlaneseq
        %v330 = vshrl.u32 %v329, 7
        %v331 = vsub.s32 0, %v330
        %v332 = vrot.slane %v322, %v331
        %v333 = vmul.f32 %v323, %v332
        %v334 = vmul.f32 %v324, %v332
        %v335 = vmul.f32 %v325, %v332
        %v336 = vmul.f32 %v326, %v332
        %v337 = vmul.f32 %v327, %v332
        %v338 = vmul.f32 %v328, %v332
        %v339 = vadd.f32 %v316, %v333
        %v340 = vadd.f32 %v317, %v334
        %v341 = vadd.f32 %v318, %v335
        %v342 = vadd.f32 %v319, %v336
        %v343 = vadd.f32 %v320, %v337
        %v344 = vadd.f32 %v321, %v338
        %v345 = vld [vmem:[#allocation2 + $0x7] sm:$0x1]
        %v346 = vld [vmem:[%s184 + $0x7] sm:$0xff]
        %v347 = vld [vmem:[%s184 + $0xf] sm:$0x1]
        %v348 = vld [vmem:[%s184 + $0x17] sm:$0xff]
        %v349 = vld [vmem:[%s184 + $0x1f] sm:$0x1]
        %v350 = vld [vmem:[%s184 + $0x27] sm:$0xff]
        %v351 = vld [vmem:[%s184 + $0x2f] sm:$0x1]
        %v352 = vlaneseq
        %v353 = vshrl.u32 %v352, 7
        %v354 = vsub.s32 0, %v353
        %v355 = vrot.slane %v345, %v354
        %v356 = vmul.f32 %v346, %v355
        %v357 = vmul.f32 %v347, %v355
        %v358 = vmul.f32 %v348, %v355
        %v359 = vmul.f32 %v349, %v355
        %v360 = vmul.f32 %v350, %v355
        %v361 = vmul.f32 %v351, %v355
        %v362 = vadd.f32 %v339, %v356
        %v363 = vadd.f32 %v340, %v357
        %v364 = vadd.f32 %v341, %v358
        %v365 = vadd.f32 %v342, %v359
        %v366 = vadd.f32 %v343, %v360
        %v367 = vadd.f32 %v344, %v361
        %s368 = scalar_lea.vmem [#allocation2], 8
        %v369 = vld [vmem:[%s368] sm:$0x1]
        %s370 = sadd.s32 %s181, 1
        %s371 = smul.u32 %s370, 16
        %s372 = scalar_lea.vmem [#allocation5], %s371
        %v373 = vld [vmem:[%s372] sm:$0xff]
        %v374 = vld [vmem:[%s372 + $0x8] sm:$0x1]
        %v375 = vld [vmem:[%s372 + $0x10] sm:$0xff]
        %v376 = vld [vmem:[%s372 + $0x18] sm:$0x1]
        %v377 = vld [vmem:[%s372 + $0x20] sm:$0xff]
        %v378 = vld [vmem:[%s372 + $0x28] sm:$0x1]
        %v379 = vlaneseq
        %v380 = vshrl.u32 %v379, 7
        %v381 = vsub.s32 0, %v380
        %v382 = vrot.slane %v369, %v381
        %v383 = vmul.f32 %v373, %v382
        %v384 = vmul.f32 %v374, %v382
        %v385 = vmul.f32 %v375, %v382
        %v386 = vmul.f32 %v376, %v382
        %v387 = vmul.f32 %v377, %v382
        %v388 = vmul.f32 %v378, %v382
        %v389 = vadd.f32 %v362, %v383
        %v390 = vadd.f32 %v363, %v384
        %v391 = vadd.f32 %v364, %v385
        %v392 = vadd.f32 %v365, %v386
        %v393 = vadd.f32 %v366, %v387
        %v394 = vadd.f32 %v367, %v388
        %v395 = vld [vmem:[%s368 + $0x1] sm:$0x1]
        %v396 = vld [vmem:[%s372 + $0x1] sm:$0xff]
        %v397 = vld [vmem:[%s372 + $0x9] sm:$0x1]
        %v398 = vld [vmem:[%s372 + $0x11] sm:$0xff]
        %v399 = vld [vmem:[%s372 + $0x19] sm:$0x1]
        %v400 = vld [vmem:[%s372 + $0x21] sm:$0xff]
        %v401 = vld [vmem:[%s372 + $0x29] sm:$0x1]
        %v402 = vlaneseq
        %v403 = vshrl.u32 %v402, 7
        %v404 = vsub.s32 0, %v403
        %v405 = vrot.slane %v395, %v404
        %v406 = vmul.f32 %v396, %v405
        %v407 = vmul.f32 %v397, %v405
        %v408 = vmul.f32 %v398, %v405
        %v409 = vmul.f32 %v399, %v405
        %v410 = vmul.f32 %v400, %v405
        %v411 = vmul.f32 %v401, %v405
        %v412 = vadd.f32 %v389, %v406
        %v413 = vadd.f32 %v390, %v407
        %v414 = vadd.f32 %v391, %v408
        %v415 = vadd.f32 %v392, %v409
        %v416 = vadd.f32 %v393, %v410
        %v417 = vadd.f32 %v394, %v411
        %v418 = vld [vmem:[%s368 + $0x2] sm:$0x1]
        %v419 = vld [vmem:[%s372 + $0x2] sm:$0xff]
        %v420 = vld [vmem:[%s372 + $0xa] sm:$0x1]
        %v421 = vld [vmem:[%s372 + $0x12] sm:$0xff]
        %v422 = vld [vmem:[%s372 + $0x1a] sm:$0x1]
        %v423 = vld [vmem:[%s372 + $0x22] sm:$0xff]
        %v424 = vld [vmem:[%s372 + $0x2a] sm:$0x1]
        %v425 = vlaneseq
        %v426 = vshrl.u32 %v425, 7
        %v427 = vsub.s32 0, %v426
        %v428 = vrot.slane %v418, %v427
        %v429 = vmul.f32 %v419, %v428
        %v430 = vmul.f32 %v420, %v428
        %v431 = vmul.f32 %v421, %v428
        %v432 = vmul.f32 %v422, %v428
        %v433 = vmul.f32 %v423, %v428
        %v434 = vmul.f32 %v424, %v428
        %v435 = vadd.f32 %v412, %v429
        %v436 = vadd.f32 %v413, %v430
        %v437 = vadd.f32 %v414, %v431
        %v438 = vadd.f32 %v415, %v432
        %v439 = vadd.f32 %v416, %v433
        %v440 = vadd.f32 %v417, %v434
        %v441 = vld [vmem:[%s368 + $0x3] sm:$0x1]
        %v442 = vld [vmem:[%s372 + $0x3] sm:$0xff]
        %v443 = vld [vmem:[%s372 + $0xb] sm:$0x1]
        %v444 = vld [vmem:[%s372 + $0x13] sm:$0xff]
        %v445 = vld [vmem:[%s372 + $0x1b] sm:$0x1]
        %v446 = vld [vmem:[%s372 + $0x23] sm:$0xff]
        %v447 = vld [vmem:[%s372 + $0x2b] sm:$0x1]
        %v448 = vlaneseq
        %v449 = vshrl.u32 %v448, 7
        %v450 = vsub.s32 0, %v449
        %v451 = vrot.slane %v441, %v450
        %v452 = vmul.f32 %v442, %v451
        %v453 = vmul.f32 %v443, %v451
        %v454 = vmul.f32 %v444, %v451
        %v455 = vmul.f32 %v445, %v451
        %v456 = vmul.f32 %v446, %v451
        %v457 = vmul.f32 %v447, %v451
        %v458 = vadd.f32 %v435, %v452
        %v459 = vadd.f32 %v436, %v453
        %v460 = vadd.f32 %v437, %v454
        %v461 = vadd.f32 %v438, %v455
        %v462 = vadd.f32 %v439, %v456
        %v463 = vadd.f32 %v440, %v457
        %v464 = vld [vmem:[%s368 + $0x4] sm:$0x1]
        %v465 = vld [vmem:[%s372 + $0x4] sm:$0xff]
        %v466 = vld [vmem:[%s372 + $0xc] sm:$0x1]
        %v467 = vld [vmem:[%s372 + $0x14] sm:$0xff]
        %v468 = vld [vmem:[%s372 + $0x1c] sm:$0x1]
        %v469 = vld [vmem:[%s372 + $0x24] sm:$0xff]
        %v470 = vld [vmem:[%s372 + $0x2c] sm:$0x1]
        %v471 = vlaneseq
        %v472 = vshrl.u32 %v471, 7
        %v473 = vsub.s32 0, %v472
        %v474 = vrot.slane %v464, %v473
        %v475 = vmul.f32 %v465, %v474
        %v476 = vmul.f32 %v466, %v474
        %v477 = vmul.f32 %v467, %v474
        %v478 = vmul.f32 %v468, %v474
        %v479 = vmul.f32 %v469, %v474
        %v480 = vmul.f32 %v470, %v474
        %v481 = vadd.f32 %v458, %v475
        %v482 = vadd.f32 %v459, %v476
        %v483 = vadd.f32 %v460, %v477
        %v484 = vadd.f32 %v461, %v478
        %v485 = vadd.f32 %v462, %v479
        %v486 = vadd.f32 %v463, %v480
        %v487 = vld [vmem:[%s368 + $0x5] sm:$0x1]
        %v488 = vld [vmem:[%s372 + $0x5] sm:$0xff]
        %v489 = vld [vmem:[%s372 + $0xd] sm:$0x1]
        %v490 = vld [vmem:[%s372 + $0x15] sm:$0xff]
        %v491 = vld [vmem:[%s372 + $0x1d] sm:$0x1]
        %v492 = vld [vmem:[%s372 + $0x25] sm:$0xff]
        %v493 = vld [vmem:[%s372 + $0x2d] sm:$0x1]
        %v494 = vlaneseq
        %v495 = vshrl.u32 %v494, 7
        %v496 = vsub.s32 0, %v495
        %v497 = vrot.slane %v487, %v496
        %v498 = vmul.f32 %v488, %v497
        %v499 = vmul.f32 %v489, %v497
        %v500 = vmul.f32 %v490, %v497
        %v501 = vmul.f32 %v491, %v497
        %v502 = vmul.f32 %v492, %v497
        %v503 = vmul.f32 %v493, %v497
        %v504 = vadd.f32 %v481, %v498
        %v505 = vadd.f32 %v482, %v499
        %v506 = vadd.f32 %v483, %v500
        %v507 = vadd.f32 %v484, %v501
        %v508 = vadd.f32 %v485, %v502
        %v509 = vadd.f32 %v486, %v503
        %v510 = vld [vmem:[%s368 + $0x6] sm:$0x1]
        %v511 = vld [vmem:[%s372 + $0x6] sm:$0xff]
        %v512 = vld [vmem:[%s372 + $0xe] sm:$0x1]
        %v513 = vld [vmem:[%s372 + $0x16] sm:$0xff]
        %v514 = vld [vmem:[%s372 + $0x1e] sm:$0x1]
        %v515 = vld [vmem:[%s372 + $0x26] sm:$0xff]
        %v516 = vld [vmem:[%s372 + $0x2e] sm:$0x1]
        %v517 = vlaneseq
        %v518 = vshrl.u32 %v517, 7
        %v519 = vsub.s32 0, %v518
        %v520 = vrot.slane %v510, %v519
        %v521 = vmul.f32 %v511, %v520
        %v522 = vmul.f32 %v512, %v520
        %v523 = vmul.f32 %v513, %v520
        %v524 = vmul.f32 %v514, %v520
        %v525 = vmul.f32 %v515, %v520
        %v526 = vmul.f32 %v516, %v520
        %v527 = vadd.f32 %v504, %v521
        %v528 = vadd.f32 %v505, %v522
        %v529 = vadd.f32 %v506, %v523
        %v530 = vadd.f32 %v507, %v524
        %v531 = vadd.f32 %v508, %v525
        %v532 = vadd.f32 %v509, %v526
        %v533 = vld [vmem:[%s368 + $0x7] sm:$0x1]
        %v534 = vld [vmem:[%s372 + $0x7] sm:$0xff]
        %v535 = vld [vmem:[%s372 + $0xf] sm:$0x1]
        %v536 = vld [vmem:[%s372 + $0x17] sm:$0xff]
        %v537 = vld [vmem:[%s372 + $0x1f] sm:$0x1]
        %v538 = vld [vmem:[%s372 + $0x27] sm:$0xff]
        %v539 = vld [vmem:[%s372 + $0x2f] sm:$0x1]
        %v540 = vlaneseq
        %v541 = vshrl.u32 %v540, 7
        %v542 = vsub.s32 0, %v541
        %v543 = vrot.slane %v533, %v542
        %v544 = vmul.f32 %v534, %v543
        %v545 = vmul.f32 %v535, %v543
        %v546 = vmul.f32 %v536, %v543
        %v547 = vmul.f32 %v537, %v543
        %v548 = vmul.f32 %v538, %v543
        %v549 = vmul.f32 %v539, %v543
        %v550 = vadd.f32 %v527, %v544
        %v551 = vadd.f32 %v528, %v545
        %v552 = vadd.f32 %v529, %v546
        %v553 = vadd.f32 %v530, %v547
        %v554 = vadd.f32 %v531, %v548
        %v555 = vadd.f32 %v532, %v549
        %s556 = scalar_lea.vmem [#allocation2], 16
        %v557 = vld [vmem:[%s556] sm:$0x1]
        %s558 = sadd.s32 %s181, 2
        %s559 = smul.u32 %s558, 16
        %s560 = scalar_lea.vmem [#allocation5], %s559
        %v561 = vld [vmem:[%s560] sm:$0xff]
        %v562 = vld [vmem:[%s560 + $0x8] sm:$0x1]
        %v563 = vld [vmem:[%s560 + $0x10] sm:$0xff]
        %v564 = vld [vmem:[%s560 + $0x18] sm:$0x1]
        %v565 = vld [vmem:[%s560 + $0x20] sm:$0xff]
        %v566 = vld [vmem:[%s560 + $0x28] sm:$0x1]
        %v567 = vlaneseq
        %v568 = vshrl.u32 %v567, 7
        %v569 = vsub.s32 0, %v568
        %v570 = vrot.slane %v557, %v569
        %v571 = vmul.f32 %v561, %v570
        %v572 = vmul.f32 %v562, %v570
        %v573 = vmul.f32 %v563, %v570
        %v574 = vmul.f32 %v564, %v570
        %v575 = vmul.f32 %v565, %v570
        %v576 = vmul.f32 %v566, %v570
        %v577 = vadd.f32 %v550, %v571
        %v578 = vadd.f32 %v551, %v572
        %v579 = vadd.f32 %v552, %v573
        %v580 = vadd.f32 %v553, %v574
        %v581 = vadd.f32 %v554, %v575
        %v582 = vadd.f32 %v555, %v576
        %v583 = vld [vmem:[%s556 + $0x1] sm:$0x1]
        %v584 = vld [vmem:[%s560 + $0x1] sm:$0xff]
        %v585 = vld [vmem:[%s560 + $0x9] sm:$0x1]
        %v586 = vld [vmem:[%s560 + $0x11] sm:$0xff]
        %v587 = vld [vmem:[%s560 + $0x19] sm:$0x1]
        %v588 = vld [vmem:[%s560 + $0x21] sm:$0xff]
        %v589 = vld [vmem:[%s560 + $0x29] sm:$0x1]
        %v590 = vlaneseq
        %v591 = vshrl.u32 %v590, 7
        %v592 = vsub.s32 0, %v591
        %v593 = vrot.slane %v583, %v592
        %v594 = vmul.f32 %v584, %v593
        %v595 = vmul.f32 %v585, %v593
        %v596 = vmul.f32 %v586, %v593
        %v597 = vmul.f32 %v587, %v593
        %v598 = vmul.f32 %v588, %v593
        %v599 = vmul.f32 %v589, %v593
        %v600 = vadd.f32 %v577, %v594
        %v601 = vadd.f32 %v578, %v595
        %v602 = vadd.f32 %v579, %v596
        %v603 = vadd.f32 %v580, %v597
        %v604 = vadd.f32 %v581, %v598
        %v605 = vadd.f32 %v582, %v599
        %v606 = vld [vmem:[%s556 + $0x2] sm:$0x1]
        %v607 = vld [vmem:[%s560 + $0x2] sm:$0xff]
        %v608 = vld [vmem:[%s560 + $0xa] sm:$0x1]
        %v609 = vld [vmem:[%s560 + $0x12] sm:$0xff]
        %v610 = vld [vmem:[%s560 + $0x1a] sm:$0x1]
        %v611 = vld [vmem:[%s560 + $0x22] sm:$0xff]
        %v612 = vld [vmem:[%s560 + $0x2a] sm:$0x1]
        %v613 = vlaneseq
        %v614 = vshrl.u32 %v613, 7
        %v615 = vsub.s32 0, %v614
        %v616 = vrot.slane %v606, %v615
        %v617 = vmul.f32 %v607, %v616
        %v618 = vmul.f32 %v608, %v616
        %v619 = vmul.f32 %v609, %v616
        %v620 = vmul.f32 %v610, %v616
        %v621 = vmul.f32 %v611, %v616
        %v622 = vmul.f32 %v612, %v616
        %v623 = vadd.f32 %v600, %v617
        %v624 = vadd.f32 %v601, %v618
        %v625 = vadd.f32 %v602, %v619
        %v626 = vadd.f32 %v603, %v620
        %v627 = vadd.f32 %v604, %v621
        %v628 = vadd.f32 %v605, %v622
        %v629 = vld [vmem:[%s556 + $0x3] sm:$0x1]
        %v630 = vld [vmem:[%s560 + $0x3] sm:$0xff]
        %v631 = vld [vmem:[%s560 + $0xb] sm:$0x1]
        %v632 = vld [vmem:[%s560 + $0x13] sm:$0xff]
        %v633 = vld [vmem:[%s560 + $0x1b] sm:$0x1]
        %v634 = vld [vmem:[%s560 + $0x23] sm:$0xff]
        %v635 = vld [vmem:[%s560 + $0x2b] sm:$0x1]
        %v636 = vlaneseq
        %v637 = vshrl.u32 %v636, 7
        %v638 = vsub.s32 0, %v637
        %v639 = vrot.slane %v629, %v638
        %v640 = vmul.f32 %v630, %v639
        %v641 = vmul.f32 %v631, %v639
        %v642 = vmul.f32 %v632, %v639
        %v643 = vmul.f32 %v633, %v639
        %v644 = vmul.f32 %v634, %v639
        %v645 = vmul.f32 %v635, %v639
        %v646 = vadd.f32 %v623, %v640
        %v647 = vadd.f32 %v624, %v641
        %v648 = vadd.f32 %v625, %v642
        %v649 = vadd.f32 %v626, %v643
        %v650 = vadd.f32 %v627, %v644
        %v651 = vadd.f32 %v628, %v645
        %v652 = vld [vmem:[%s556 + $0x4] sm:$0x1]
        %v653 = vld [vmem:[%s560 + $0x4] sm:$0xff]
        %v654 = vld [vmem:[%s560 + $0xc] sm:$0x1]
        %v655 = vld [vmem:[%s560 + $0x14] sm:$0xff]
        %v656 = vld [vmem:[%s560 + $0x1c] sm:$0x1]
        %v657 = vld [vmem:[%s560 + $0x24] sm:$0xff]
        %v658 = vld [vmem:[%s560 + $0x2c] sm:$0x1]
        %v659 = vlaneseq
        %v660 = vshrl.u32 %v659, 7
        %v661 = vsub.s32 0, %v660
        %v662 = vrot.slane %v652, %v661
        %v663 = vmul.f32 %v653, %v662
        %v664 = vmul.f32 %v654, %v662
        %v665 = vmul.f32 %v655, %v662
        %v666 = vmul.f32 %v656, %v662
        %v667 = vmul.f32 %v657, %v662
        %v668 = vmul.f32 %v658, %v662
        %v669 = vadd.f32 %v646, %v663
        %v670 = vadd.f32 %v647, %v664
        %v671 = vadd.f32 %v648, %v665
        %v672 = vadd.f32 %v649, %v666
        %v673 = vadd.f32 %v650, %v667
        %v674 = vadd.f32 %v651, %v668
        %v675 = vld [vmem:[%s556 + $0x5] sm:$0x1]
        %v676 = vld [vmem:[%s560 + $0x5] sm:$0xff]
        %v677 = vld [vmem:[%s560 + $0xd] sm:$0x1]
        %v678 = vld [vmem:[%s560 + $0x15] sm:$0xff]
        %v679 = vld [vmem:[%s560 + $0x1d] sm:$0x1]
        %v680 = vld [vmem:[%s560 + $0x25] sm:$0xff]
        %v681 = vld [vmem:[%s560 + $0x2d] sm:$0x1]
        %v682 = vlaneseq
        %v683 = vshrl.u32 %v682, 7
        %v684 = vsub.s32 0, %v683
        %v685 = vrot.slane %v675, %v684
        %v686 = vmul.f32 %v676, %v685
        %v687 = vmul.f32 %v677, %v685
        %v688 = vmul.f32 %v678, %v685
        %v689 = vmul.f32 %v679, %v685
        %v690 = vmul.f32 %v680, %v685
        %v691 = vmul.f32 %v681, %v685
        %v692 = vadd.f32 %v669, %v686
        %v693 = vadd.f32 %v670, %v687
        %v694 = vadd.f32 %v671, %v688
        %v695 = vadd.f32 %v672, %v689
        %v696 = vadd.f32 %v673, %v690
        %v697 = vadd.f32 %v674, %v691
        %v698 = vld [vmem:[%s556 + $0x6] sm:$0x1]
        %v699 = vld [vmem:[%s560 + $0x6] sm:$0xff]
        %v700 = vld [vmem:[%s560 + $0xe] sm:$0x1]
        %v701 = vld [vmem:[%s560 + $0x16] sm:$0xff]
        %v702 = vld [vmem:[%s560 + $0x1e] sm:$0x1]
        %v703 = vld [vmem:[%s560 + $0x26] sm:$0xff]
        %v704 = vld [vmem:[%s560 + $0x2e] sm:$0x1]
        %v705 = vlaneseq
        %v706 = vshrl.u32 %v705, 7
        %v707 = vsub.s32 0, %v706
        %v708 = vrot.slane %v698, %v707
        %v709 = vmul.f32 %v699, %v708
        %v710 = vmul.f32 %v700, %v708
        %v711 = vmul.f32 %v701, %v708
        %v712 = vmul.f32 %v702, %v708
        %v713 = vmul.f32 %v703, %v708
        %v714 = vmul.f32 %v704, %v708
        %v715 = vadd.f32 %v692, %v709
        %v716 = vadd.f32 %v693, %v710
        %v717 = vadd.f32 %v694, %v711
        %v718 = vadd.f32 %v695, %v712
        %v719 = vadd.f32 %v696, %v713
        %v720 = vadd.f32 %v697, %v714
        %v721 = vld [vmem:[%s556 + $0x7] sm:$0x1]
        %v722 = vld [vmem:[%s560 + $0x7] sm:$0xff]
        %v723 = vld [vmem:[%s560 + $0xf] sm:$0x1]
        %v724 = vld [vmem:[%s560 + $0x17] sm:$0xff]
        %v725 = vld [vmem:[%s560 + $0x1f] sm:$0x1]
        %v726 = vld [vmem:[%s560 + $0x27] sm:$0xff]
        %v727 = vld [vmem:[%s560 + $0x2f] sm:$0x1]
        %v728 = vlaneseq
        %v729 = vshrl.u32 %v728, 7
        %v730 = vsub.s32 0, %v729
        %v731 = vrot.slane %v721, %v730
        %v732 = vmul.f32 %v722, %v731
        %v733 = vmul.f32 %v723, %v731
        %v734 = vmul.f32 %v724, %v731
        %v735 = vmul.f32 %v725, %v731
        %v736 = vmul.f32 %v726, %v731
        %v737 = vmul.f32 %v727, %v731
        %v738 = vadd.f32 %v715, %v732
        %v739 = vadd.f32 %v716, %v733
        %v740 = vadd.f32 %v717, %v734
        %v741 = vadd.f32 %v718, %v735
        %v742 = vadd.f32 %v719, %v736
        %v743 = vadd.f32 %v720, %v737
        %s744 = scalar_lea.vmem [#allocation2], 24
        %v745 = vld [vmem:[%s744] sm:$0x1]
        %s746 = sadd.s32 %s181, 3
        %s747 = smul.u32 %s746, 16
        %s748 = scalar_lea.vmem [#allocation5], %s747
        %v749 = vld [vmem:[%s748] sm:$0xff]
        %v750 = vld [vmem:[%s748 + $0x8] sm:$0x1]
        %v751 = vld [vmem:[%s748 + $0x10] sm:$0xff]
        %v752 = vld [vmem:[%s748 + $0x18] sm:$0x1]
        %v753 = vld [vmem:[%s748 + $0x20] sm:$0xff]
        %v754 = vld [vmem:[%s748 + $0x28] sm:$0x1]
        %v755 = vlaneseq
        %v756 = vshrl.u32 %v755, 7
        %v757 = vsub.s32 0, %v756
        %v758 = vrot.slane %v745, %v757
        %v759 = vmul.f32 %v749, %v758
        %v760 = vmul.f32 %v750, %v758
        %v761 = vmul.f32 %v751, %v758
        %v762 = vmul.f32 %v752, %v758
        %v763 = vmul.f32 %v753, %v758
        %v764 = vmul.f32 %v754, %v758
        %v765 = vadd.f32 %v738, %v759
        %v766 = vadd.f32 %v739, %v760
        %v767 = vadd.f32 %v740, %v761
        %v768 = vadd.f32 %v741, %v762
        %v769 = vadd.f32 %v742, %v763
        %v770 = vadd.f32 %v743, %v764
        %v771 = vld [vmem:[%s744 + $0x1] sm:$0x1]
        %v772 = vld [vmem:[%s748 + $0x1] sm:$0xff]
        %v773 = vld [vmem:[%s748 + $0x9] sm:$0x1]
        %v774 = vld [vmem:[%s748 + $0x11] sm:$0xff]
        %v775 = vld [vmem:[%s748 + $0x19] sm:$0x1]
        %v776 = vld [vmem:[%s748 + $0x21] sm:$0xff]
        %v777 = vld [vmem:[%s748 + $0x29] sm:$0x1]
        %v778 = vlaneseq
        %v779 = vshrl.u32 %v778, 7
        %v780 = vsub.s32 0, %v779
        %v781 = vrot.slane %v771, %v780
        %v782 = vmul.f32 %v772, %v781
        %v783 = vmul.f32 %v773, %v781
        %v784 = vmul.f32 %v774, %v781
        %v785 = vmul.f32 %v775, %v781
        %v786 = vmul.f32 %v776, %v781
        %v787 = vmul.f32 %v777, %v781
        %v788 = vadd.f32 %v765, %v782
        %v789 = vadd.f32 %v766, %v783
        %v790 = vadd.f32 %v767, %v784
        %v791 = vadd.f32 %v768, %v785
        %v792 = vadd.f32 %v769, %v786
        %v793 = vadd.f32 %v770, %v787
        %v794 = vld [vmem:[%s744 + $0x2] sm:$0x1]
        %v795 = vld [vmem:[%s748 + $0x2] sm:$0xff]
        %v796 = vld [vmem:[%s748 + $0xa] sm:$0x1]
        %v797 = vld [vmem:[%s748 + $0x12] sm:$0xff]
        %v798 = vld [vmem:[%s748 + $0x1a] sm:$0x1]
        %v799 = vld [vmem:[%s748 + $0x22] sm:$0xff]
        %v800 = vld [vmem:[%s748 + $0x2a] sm:$0x1]
        %v801 = vlaneseq
        %v802 = vshrl.u32 %v801, 7
        %v803 = vsub.s32 0, %v802
        %v804 = vrot.slane %v794, %v803
        %v805 = vmul.f32 %v795, %v804
        %v806 = vmul.f32 %v796, %v804
        %v807 = vmul.f32 %v797, %v804
        %v808 = vmul.f32 %v798, %v804
        %v809 = vmul.f32 %v799, %v804
        %v810 = vmul.f32 %v800, %v804
        %v811 = vadd.f32 %v788, %v805
        %v812 = vadd.f32 %v789, %v806
        %v813 = vadd.f32 %v790, %v807
        %v814 = vadd.f32 %v791, %v808
        %v815 = vadd.f32 %v792, %v809
        %v816 = vadd.f32 %v793, %v810
        %v817 = vld [vmem:[%s744 + $0x3] sm:$0x1]
        %v818 = vld [vmem:[%s748 + $0x3] sm:$0xff]
        %v819 = vld [vmem:[%s748 + $0xb] sm:$0x1]
        %v820 = vld [vmem:[%s748 + $0x13] sm:$0xff]
        %v821 = vld [vmem:[%s748 + $0x1b] sm:$0x1]
        %v822 = vld [vmem:[%s748 + $0x23] sm:$0xff]
        %v823 = vld [vmem:[%s748 + $0x2b] sm:$0x1]
        %v824 = vlaneseq
        %v825 = vshrl.u32 %v824, 7
        %v826 = vsub.s32 0, %v825
        %v827 = vrot.slane %v817, %v826
        %v828 = vmul.f32 %v818, %v827
        %v829 = vmul.f32 %v819, %v827
        %v830 = vmul.f32 %v820, %v827
        %v831 = vmul.f32 %v821, %v827
        %v832 = vmul.f32 %v822, %v827
        %v833 = vmul.f32 %v823, %v827
        %v834 = vadd.f32 %v811, %v828
        %v835 = vadd.f32 %v812, %v829
        %v836 = vadd.f32 %v813, %v830
        %v837 = vadd.f32 %v814, %v831
        %v838 = vadd.f32 %v815, %v832
        %v839 = vadd.f32 %v816, %v833
        %v840 = vld [vmem:[%s744 + $0x4] sm:$0x1]
        %v841 = vld [vmem:[%s748 + $0x4] sm:$0xff]
        %v842 = vld [vmem:[%s748 + $0xc] sm:$0x1]
        %v843 = vld [vmem:[%s748 + $0x14] sm:$0xff]
        %v844 = vld [vmem:[%s748 + $0x1c] sm:$0x1]
        %v845 = vld [vmem:[%s748 + $0x24] sm:$0xff]
        %v846 = vld [vmem:[%s748 + $0x2c] sm:$0x1]
        %v847 = vlaneseq
        %v848 = vshrl.u32 %v847, 7
        %v849 = vsub.s32 0, %v848
        %v850 = vrot.slane %v840, %v849
        %v851 = vmul.f32 %v841, %v850
        %v852 = vmul.f32 %v842, %v850
        %v853 = vmul.f32 %v843, %v850
        %v854 = vmul.f32 %v844, %v850
        %v855 = vmul.f32 %v845, %v850
        %v856 = vmul.f32 %v846, %v850
        %v857 = vadd.f32 %v834, %v851
        %v858 = vadd.f32 %v835, %v852
        %v859 = vadd.f32 %v836, %v853
        %v860 = vadd.f32 %v837, %v854
        %v861 = vadd.f32 %v838, %v855
        %v862 = vadd.f32 %v839, %v856
        %v863 = vld [vmem:[%s744 + $0x5] sm:$0x1]
        %v864 = vld [vmem:[%s748 + $0x5] sm:$0xff]
        %v865 = vld [vmem:[%s748 + $0xd] sm:$0x1]
        %v866 = vld [vmem:[%s748 + $0x15] sm:$0xff]
        %v867 = vld [vmem:[%s748 + $0x1d] sm:$0x1]
        %v868 = vld [vmem:[%s748 + $0x25] sm:$0xff]
        %v869 = vld [vmem:[%s748 + $0x2d] sm:$0x1]
        %v870 = vlaneseq
        %v871 = vshrl.u32 %v870, 7
        %v872 = vsub.s32 0, %v871
        %v873 = vrot.slane %v863, %v872
        %v874 = vmul.f32 %v864, %v873
        %v875 = vmul.f32 %v865, %v873
        %v876 = vmul.f32 %v866, %v873
        %v877 = vmul.f32 %v867, %v873
        %v878 = vmul.f32 %v868, %v873
        %v879 = vmul.f32 %v869, %v873
        %v880 = vadd.f32 %v857, %v874
        %v881 = vadd.f32 %v858, %v875
        %v882 = vadd.f32 %v859, %v876
        %v883 = vadd.f32 %v860, %v877
        %v884 = vadd.f32 %v861, %v878
        %v885 = vadd.f32 %v862, %v879
        %v886 = vld [vmem:[%s744 + $0x6] sm:$0x1]
        %v887 = vld [vmem:[%s748 + $0x6] sm:$0xff]
        %v888 = vld [vmem:[%s748 + $0xe] sm:$0x1]
        %v889 = vld [vmem:[%s748 + $0x16] sm:$0xff]
        %v890 = vld [vmem:[%s748 + $0x1e] sm:$0x1]
        %v891 = vld [vmem:[%s748 + $0x26] sm:$0xff]
        %v892 = vld [vmem:[%s748 + $0x2e] sm:$0x1]
        %v893 = vlaneseq
        %v894 = vshrl.u32 %v893, 7
        %v895 = vsub.s32 0, %v894
        %v896 = vrot.slane %v886, %v895
        %v897 = vmul.f32 %v887, %v896
        %v898 = vmul.f32 %v888, %v896
        %v899 = vmul.f32 %v889, %v896
        %v900 = vmul.f32 %v890, %v896
        %v901 = vmul.f32 %v891, %v896
        %v902 = vmul.f32 %v892, %v896
        %v903 = vadd.f32 %v880, %v897
        %v904 = vadd.f32 %v881, %v898
        %v905 = vadd.f32 %v882, %v899
        %v906 = vadd.f32 %v883, %v900
        %v907 = vadd.f32 %v884, %v901
        %v908 = vadd.f32 %v885, %v902
        %v909 = vld [vmem:[%s744 + $0x7] sm:$0x1]
        %v910 = vld [vmem:[%s748 + $0x7] sm:$0xff]
        %v911 = vld [vmem:[%s748 + $0xf] sm:$0x1]
        %v912 = vld [vmem:[%s748 + $0x17] sm:$0xff]
        %v913 = vld [vmem:[%s748 + $0x1f] sm:$0x1]
        %v914 = vld [vmem:[%s748 + $0x27] sm:$0xff]
        %v915 = vld [vmem:[%s748 + $0x2f] sm:$0x1]
        %v916 = vlaneseq
        %v917 = vshrl.u32 %v916, 7
        %v918 = vsub.s32 0, %v917
        %v919 = vrot.slane %v909, %v918
        %v920 = vmul.f32 %v910, %v919
        %v921 = vmul.f32 %v911, %v919
        %v922 = vmul.f32 %v912, %v919
        %v923 = vmul.f32 %v913, %v919
        %v924 = vmul.f32 %v914, %v919
        %v925 = vmul.f32 %v915, %v919
        %v926 = vadd.f32 %v903, %v920
        %v927 = vadd.f32 %v904, %v921
        %v928 = vadd.f32 %v905, %v922
        %v929 = vadd.f32 %v906, %v923
        %v930 = vadd.f32 %v907, %v924
        %v931 = vadd.f32 %v908, %v925
        %s932 = scalar_lea.vmem [#allocation2], 32
        %v933 = vld [vmem:[%s932] sm:$0x1]
        %s934 = sadd.s32 %s181, 4
        %s935 = smul.u32 %s934, 16
        %s936 = scalar_lea.vmem [#allocation5], %s935
        %v937 = vld [vmem:[%s936] sm:$0xff]
        %v938 = vld [vmem:[%s936 + $0x8] sm:$0x1]
        %v939 = vld [vmem:[%s936 + $0x10] sm:$0xff]
        %v940 = vld [vmem:[%s936 + $0x18] sm:$0x1]
        %v941 = vld [vmem:[%s936 + $0x20] sm:$0xff]
        %v942 = vld [vmem:[%s936 + $0x28] sm:$0x1]
        %v943 = vlaneseq
        %v944 = vshrl.u32 %v943, 7
        %v945 = vsub.s32 0, %v944
        %v946 = vrot.slane %v933, %v945
        %v947 = vmul.f32 %v937, %v946
        %v948 = vmul.f32 %v938, %v946
        %v949 = vmul.f32 %v939, %v946
        %v950 = vmul.f32 %v940, %v946
        %v951 = vmul.f32 %v941, %v946
        %v952 = vmul.f32 %v942, %v946
        %v953 = vadd.f32 %v926, %v947
        %v954 = vadd.f32 %v927, %v948
        %v955 = vadd.f32 %v928, %v949
        %v956 = vadd.f32 %v929, %v950
        %v957 = vadd.f32 %v930, %v951
        %v958 = vadd.f32 %v931, %v952
        %v959 = vld [vmem:[%s932 + $0x1] sm:$0x1]
        %v960 = vld [vmem:[%s936 + $0x1] sm:$0xff]
        %v961 = vld [vmem:[%s936 + $0x9] sm:$0x1]
        %v962 = vld [vmem:[%s936 + $0x11] sm:$0xff]
        %v963 = vld [vmem:[%s936 + $0x19] sm:$0x1]
        %v964 = vld [vmem:[%s936 + $0x21] sm:$0xff]
        %v965 = vld [vmem:[%s936 + $0x29] sm:$0x1]
        %v966 = vlaneseq
        %v967 = vshrl.u32 %v966, 7
        %v968 = vsub.s32 0, %v967
        %v969 = vrot.slane %v959, %v968
        %v970 = vmul.f32 %v960, %v969
        %v971 = vmul.f32 %v961, %v969
        %v972 = vmul.f32 %v962, %v969
        %v973 = vmul.f32 %v963, %v969
        %v974 = vmul.f32 %v964, %v969
        %v975 = vmul.f32 %v965, %v969
        %v976 = vadd.f32 %v953, %v970
        %v977 = vadd.f32 %v954, %v971
        %v978 = vadd.f32 %v955, %v972
        %v979 = vadd.f32 %v956, %v973
        %v980 = vadd.f32 %v957, %v974
        %v981 = vadd.f32 %v958, %v975
        %v982 = vld [vmem:[%s932 + $0x2] sm:$0x1]
        %v983 = vld [vmem:[%s936 + $0x2] sm:$0xff]
        %v984 = vld [vmem:[%s936 + $0xa] sm:$0x1]
        %v985 = vld [vmem:[%s936 + $0x12] sm:$0xff]
        %v986 = vld [vmem:[%s936 + $0x1a] sm:$0x1]
        %v987 = vld [vmem:[%s936 + $0x22] sm:$0xff]
        %v988 = vld [vmem:[%s936 + $0x2a] sm:$0x1]
        %v989 = vlaneseq
        %v990 = vshrl.u32 %v989, 7
        %v991 = vsub.s32 0, %v990
        %v992 = vrot.slane %v982, %v991
        %v993 = vmul.f32 %v983, %v992
        %v994 = vmul.f32 %v984, %v992
        %v995 = vmul.f32 %v985, %v992
        %v996 = vmul.f32 %v986, %v992
        %v997 = vmul.f32 %v987, %v992
        %v998 = vmul.f32 %v988, %v992
        %v999 = vadd.f32 %v976, %v993
        %v1000 = vadd.f32 %v977, %v994
        %v1001 = vadd.f32 %v978, %v995
        %v1002 = vadd.f32 %v979, %v996
        %v1003 = vadd.f32 %v980, %v997
        %v1004 = vadd.f32 %v981, %v998
        %v1005 = vld [vmem:[%s932 + $0x3] sm:$0x1]
        %v1006 = vld [vmem:[%s936 + $0x3] sm:$0xff]
        %v1007 = vld [vmem:[%s936 + $0xb] sm:$0x1]
        %v1008 = vld [vmem:[%s936 + $0x13] sm:$0xff]
        %v1009 = vld [vmem:[%s936 + $0x1b] sm:$0x1]
        %v1010 = vld [vmem:[%s936 + $0x23] sm:$0xff]
        %v1011 = vld [vmem:[%s936 + $0x2b] sm:$0x1]
        %v1012 = vlaneseq
        %v1013 = vshrl.u32 %v1012, 7
        %v1014 = vsub.s32 0, %v1013
        %v1015 = vrot.slane %v1005, %v1014
        %v1016 = vmul.f32 %v1006, %v1015
        %v1017 = vmul.f32 %v1007, %v1015
        %v1018 = vmul.f32 %v1008, %v1015
        %v1019 = vmul.f32 %v1009, %v1015
        %v1020 = vmul.f32 %v1010, %v1015
        %v1021 = vmul.f32 %v1011, %v1015
        %v1022 = vadd.f32 %v999, %v1016
        %v1023 = vadd.f32 %v1000, %v1017
        %v1024 = vadd.f32 %v1001, %v1018
        %v1025 = vadd.f32 %v1002, %v1019
        %v1026 = vadd.f32 %v1003, %v1020
        %v1027 = vadd.f32 %v1004, %v1021
        %v1028 = vld [vmem:[%s932 + $0x4] sm:$0x1]
        %v1029 = vld [vmem:[%s936 + $0x4] sm:$0xff]
        %v1030 = vld [vmem:[%s936 + $0xc] sm:$0x1]
        %v1031 = vld [vmem:[%s936 + $0x14] sm:$0xff]
        %v1032 = vld [vmem:[%s936 + $0x1c] sm:$0x1]
        %v1033 = vld [vmem:[%s936 + $0x24] sm:$0xff]
        %v1034 = vld [vmem:[%s936 + $0x2c] sm:$0x1]
        %v1035 = vlaneseq
        %v1036 = vshrl.u32 %v1035, 7
        %v1037 = vsub.s32 0, %v1036
        %v1038 = vrot.slane %v1028, %v1037
        %v1039 = vmul.f32 %v1029, %v1038
        %v1040 = vmul.f32 %v1030, %v1038
        %v1041 = vmul.f32 %v1031, %v1038
        %v1042 = vmul.f32 %v1032, %v1038
        %v1043 = vmul.f32 %v1033, %v1038
        %v1044 = vmul.f32 %v1034, %v1038
        %v1045 = vadd.f32 %v1022, %v1039
        %v1046 = vadd.f32 %v1023, %v1040
        %v1047 = vadd.f32 %v1024, %v1041
        %v1048 = vadd.f32 %v1025, %v1042
        %v1049 = vadd.f32 %v1026, %v1043
        %v1050 = vadd.f32 %v1027, %v1044
        %v1051 = vld [vmem:[%s932 + $0x5] sm:$0x1]
        %v1052 = vld [vmem:[%s936 + $0x5] sm:$0xff]
        %v1053 = vld [vmem:[%s936 + $0xd] sm:$0x1]
        %v1054 = vld [vmem:[%s936 + $0x15] sm:$0xff]
        %v1055 = vld [vmem:[%s936 + $0x1d] sm:$0x1]
        %v1056 = vld [vmem:[%s936 + $0x25] sm:$0xff]
        %v1057 = vld [vmem:[%s936 + $0x2d] sm:$0x1]
        %v1058 = vlaneseq
        %v1059 = vshrl.u32 %v1058, 7
        %v1060 = vsub.s32 0, %v1059
        %v1061 = vrot.slane %v1051, %v1060
        %v1062 = vmul.f32 %v1052, %v1061
        %v1063 = vmul.f32 %v1053, %v1061
        %v1064 = vmul.f32 %v1054, %v1061
        %v1065 = vmul.f32 %v1055, %v1061
        %v1066 = vmul.f32 %v1056, %v1061
        %v1067 = vmul.f32 %v1057, %v1061
        %v1068 = vadd.f32 %v1045, %v1062
        %v1069 = vadd.f32 %v1046, %v1063
        %v1070 = vadd.f32 %v1047, %v1064
        %v1071 = vadd.f32 %v1048, %v1065
        %v1072 = vadd.f32 %v1049, %v1066
        %v1073 = vadd.f32 %v1050, %v1067
        %v1074 = vld [vmem:[%s932 + $0x6] sm:$0x1]
        %v1075 = vld [vmem:[%s936 + $0x6] sm:$0xff]
        %v1076 = vld [vmem:[%s936 + $0xe] sm:$0x1]
        %v1077 = vld [vmem:[%s936 + $0x16] sm:$0xff]
        %v1078 = vld [vmem:[%s936 + $0x1e] sm:$0x1]
        %v1079 = vld [vmem:[%s936 + $0x26] sm:$0xff]
        %v1080 = vld [vmem:[%s936 + $0x2e] sm:$0x1]
        %v1081 = vlaneseq
        %v1082 = vshrl.u32 %v1081, 7
        %v1083 = vsub.s32 0, %v1082
        %v1084 = vrot.slane %v1074, %v1083
        %v1085 = vmul.f32 %v1075, %v1084
        %v1086 = vmul.f32 %v1076, %v1084
        %v1087 = vmul.f32 %v1077, %v1084
        %v1088 = vmul.f32 %v1078, %v1084
        %v1089 = vmul.f32 %v1079, %v1084
        %v1090 = vmul.f32 %v1080, %v1084
        %v1091 = vadd.f32 %v1068, %v1085
        %v1092 = vadd.f32 %v1069, %v1086
        %v1093 = vadd.f32 %v1070, %v1087
        %v1094 = vadd.f32 %v1071, %v1088
        %v1095 = vadd.f32 %v1072, %v1089
        %v1096 = vadd.f32 %v1073, %v1090
        %v1097 = vld [vmem:[%s932 + $0x7] sm:$0x1]
        %v1098 = vld [vmem:[%s936 + $0x7] sm:$0xff]
        %v1099 = vld [vmem:[%s936 + $0xf] sm:$0x1]
        %v1100 = vld [vmem:[%s936 + $0x17] sm:$0xff]
        %v1101 = vld [vmem:[%s936 + $0x1f] sm:$0x1]
        %v1102 = vld [vmem:[%s936 + $0x27] sm:$0xff]
        %v1103 = vld [vmem:[%s936 + $0x2f] sm:$0x1]
        %v1104 = vlaneseq
        %v1105 = vshrl.u32 %v1104, 7
        %v1106 = vsub.s32 0, %v1105
        %v1107 = vrot.slane %v1097, %v1106
        %v1108 = vmul.f32 %v1098, %v1107
        %v1109 = vmul.f32 %v1099, %v1107
        %v1110 = vmul.f32 %v1100, %v1107
        %v1111 = vmul.f32 %v1101, %v1107
        %v1112 = vmul.f32 %v1102, %v1107
        %v1113 = vmul.f32 %v1103, %v1107
        %v1114 = vadd.f32 %v1091, %v1108
        %v1115 = vadd.f32 %v1092, %v1109
        %v1116 = vadd.f32 %v1093, %v1110
        %v1117 = vadd.f32 %v1094, %v1111
        %v1118 = vadd.f32 %v1095, %v1112
        %v1119 = vadd.f32 %v1096, %v1113
        %s1120 = scalar_lea.vmem [#allocation2], 40
        %v1121 = vld [vmem:[%s1120] sm:$0x1]
        %s1122 = sadd.s32 %s181, 5
        %s1123 = smul.u32 %s1122, 16
        %s1124 = scalar_lea.vmem [#allocation5], %s1123
        %v1125 = vld [vmem:[%s1124] sm:$0xff]
        %v1126 = vld [vmem:[%s1124 + $0x8] sm:$0x1]
        %v1127 = vld [vmem:[%s1124 + $0x10] sm:$0xff]
        %v1128 = vld [vmem:[%s1124 + $0x18] sm:$0x1]
        %v1129 = vld [vmem:[%s1124 + $0x20] sm:$0xff]
        %v1130 = vld [vmem:[%s1124 + $0x28] sm:$0x1]
        %v1131 = vlaneseq
        %v1132 = vshrl.u32 %v1131, 7
        %v1133 = vsub.s32 0, %v1132
        %v1134 = vrot.slane %v1121, %v1133
        %v1135 = vmul.f32 %v1125, %v1134
        %v1136 = vmul.f32 %v1126, %v1134
        %v1137 = vmul.f32 %v1127, %v1134
        %v1138 = vmul.f32 %v1128, %v1134
        %v1139 = vmul.f32 %v1129, %v1134
        %v1140 = vmul.f32 %v1130, %v1134
        %v1141 = vadd.f32 %v1114, %v1135
        %v1142 = vadd.f32 %v1115, %v1136
        %v1143 = vadd.f32 %v1116, %v1137
        %v1144 = vadd.f32 %v1117, %v1138
        %v1145 = vadd.f32 %v1118, %v1139
        %v1146 = vadd.f32 %v1119, %v1140
        %v1147 = vld [vmem:[%s1120 + $0x1] sm:$0x1]
        %v1148 = vld [vmem:[%s1124 + $0x1] sm:$0xff]
        %v1149 = vld [vmem:[%s1124 + $0x9] sm:$0x1]
        %v1150 = vld [vmem:[%s1124 + $0x11] sm:$0xff]
        %v1151 = vld [vmem:[%s1124 + $0x19] sm:$0x1]
        %v1152 = vld [vmem:[%s1124 + $0x21] sm:$0xff]
        %v1153 = vld [vmem:[%s1124 + $0x29] sm:$0x1]
        %v1154 = vlaneseq
        %v1155 = vshrl.u32 %v1154, 7
        %v1156 = vsub.s32 0, %v1155
        %v1157 = vrot.slane %v1147, %v1156
        %v1158 = vmul.f32 %v1148, %v1157
        %v1159 = vmul.f32 %v1149, %v1157
        %v1160 = vmul.f32 %v1150, %v1157
        %v1161 = vmul.f32 %v1151, %v1157
        %v1162 = vmul.f32 %v1152, %v1157
        %v1163 = vmul.f32 %v1153, %v1157
        %v1164 = vadd.f32 %v1141, %v1158
        %v1165 = vadd.f32 %v1142, %v1159
        %v1166 = vadd.f32 %v1143, %v1160
        %v1167 = vadd.f32 %v1144, %v1161
        %v1168 = vadd.f32 %v1145, %v1162
        %v1169 = vadd.f32 %v1146, %v1163
        %v1170 = vld [vmem:[%s1120 + $0x2] sm:$0x1]
        %v1171 = vld [vmem:[%s1124 + $0x2] sm:$0xff]
        %v1172 = vld [vmem:[%s1124 + $0xa] sm:$0x1]
        %v1173 = vld [vmem:[%s1124 + $0x12] sm:$0xff]
        %v1174 = vld [vmem:[%s1124 + $0x1a] sm:$0x1]
        %v1175 = vld [vmem:[%s1124 + $0x22] sm:$0xff]
        %v1176 = vld [vmem:[%s1124 + $0x2a] sm:$0x1]
        %v1177 = vlaneseq
        %v1178 = vshrl.u32 %v1177, 7
        %v1179 = vsub.s32 0, %v1178
        %v1180 = vrot.slane %v1170, %v1179
        %v1181 = vmul.f32 %v1171, %v1180
        %v1182 = vmul.f32 %v1172, %v1180
        %v1183 = vmul.f32 %v1173, %v1180
        %v1184 = vmul.f32 %v1174, %v1180
        %v1185 = vmul.f32 %v1175, %v1180
        %v1186 = vmul.f32 %v1176, %v1180
        %v1187 = vadd.f32 %v1164, %v1181
        %v1188 = vadd.f32 %v1165, %v1182
        %v1189 = vadd.f32 %v1166, %v1183
        %v1190 = vadd.f32 %v1167, %v1184
        %v1191 = vadd.f32 %v1168, %v1185
        %v1192 = vadd.f32 %v1169, %v1186
        %v1193 = vld [vmem:[%s1120 + $0x3] sm:$0x1]
        %v1194 = vld [vmem:[%s1124 + $0x3] sm:$0xff]
        %v1195 = vld [vmem:[%s1124 + $0xb] sm:$0x1]
        %v1196 = vld [vmem:[%s1124 + $0x13] sm:$0xff]
        %v1197 = vld [vmem:[%s1124 + $0x1b] sm:$0x1]
        %v1198 = vld [vmem:[%s1124 + $0x23] sm:$0xff]
        %v1199 = vld [vmem:[%s1124 + $0x2b] sm:$0x1]
        %v1200 = vlaneseq
        %v1201 = vshrl.u32 %v1200, 7
        %v1202 = vsub.s32 0, %v1201
        %v1203 = vrot.slane %v1193, %v1202
        %v1204 = vmul.f32 %v1194, %v1203
        %v1205 = vmul.f32 %v1195, %v1203
        %v1206 = vmul.f32 %v1196, %v1203
        %v1207 = vmul.f32 %v1197, %v1203
        %v1208 = vmul.f32 %v1198, %v1203
        %v1209 = vmul.f32 %v1199, %v1203
        %v1210 = vadd.f32 %v1187, %v1204
        %v1211 = vadd.f32 %v1188, %v1205
        %v1212 = vadd.f32 %v1189, %v1206
        %v1213 = vadd.f32 %v1190, %v1207
        %v1214 = vadd.f32 %v1191, %v1208
        %v1215 = vadd.f32 %v1192, %v1209
        %v1216 = vld [vmem:[%s1120 + $0x4] sm:$0x1]
        %v1217 = vld [vmem:[%s1124 + $0x4] sm:$0xff]
        %v1218 = vld [vmem:[%s1124 + $0xc] sm:$0x1]
        %v1219 = vld [vmem:[%s1124 + $0x14] sm:$0xff]
        %v1220 = vld [vmem:[%s1124 + $0x1c] sm:$0x1]
        %v1221 = vld [vmem:[%s1124 + $0x24] sm:$0xff]
        %v1222 = vld [vmem:[%s1124 + $0x2c] sm:$0x1]
        %v1223 = vlaneseq
        %v1224 = vshrl.u32 %v1223, 7
        %v1225 = vsub.s32 0, %v1224
        %v1226 = vrot.slane %v1216, %v1225
        %v1227 = vmul.f32 %v1217, %v1226
        %v1228 = vmul.f32 %v1218, %v1226
        %v1229 = vmul.f32 %v1219, %v1226
        %v1230 = vmul.f32 %v1220, %v1226
        %v1231 = vmul.f32 %v1221, %v1226
        %v1232 = vmul.f32 %v1222, %v1226
        %v1233 = vadd.f32 %v1210, %v1227
        %v1234 = vadd.f32 %v1211, %v1228
        %v1235 = vadd.f32 %v1212, %v1229
        %v1236 = vadd.f32 %v1213, %v1230
        %v1237 = vadd.f32 %v1214, %v1231
        %v1238 = vadd.f32 %v1215, %v1232
        %v1239 = vld [vmem:[%s1120 + $0x5] sm:$0x1]
        %v1240 = vld [vmem:[%s1124 + $0x5] sm:$0xff]
        %v1241 = vld [vmem:[%s1124 + $0xd] sm:$0x1]
        %v1242 = vld [vmem:[%s1124 + $0x15] sm:$0xff]
        %v1243 = vld [vmem:[%s1124 + $0x1d] sm:$0x1]
        %v1244 = vld [vmem:[%s1124 + $0x25] sm:$0xff]
        %v1245 = vld [vmem:[%s1124 + $0x2d] sm:$0x1]
        %v1246 = vlaneseq
        %v1247 = vshrl.u32 %v1246, 7
        %v1248 = vsub.s32 0, %v1247
        %v1249 = vrot.slane %v1239, %v1248
        %v1250 = vmul.f32 %v1240, %v1249
        %v1251 = vmul.f32 %v1241, %v1249
        %v1252 = vmul.f32 %v1242, %v1249
        %v1253 = vmul.f32 %v1243, %v1249
        %v1254 = vmul.f32 %v1244, %v1249
        %v1255 = vmul.f32 %v1245, %v1249
        %v1256 = vadd.f32 %v1233, %v1250
        %v1257 = vadd.f32 %v1234, %v1251
        %v1258 = vadd.f32 %v1235, %v1252
        %v1259 = vadd.f32 %v1236, %v1253
        %v1260 = vadd.f32 %v1237, %v1254
        %v1261 = vadd.f32 %v1238, %v1255
        %v1262 = vld [vmem:[%s1120 + $0x6] sm:$0x1]
        %v1263 = vld [vmem:[%s1124 + $0x6] sm:$0xff]
        %v1264 = vld [vmem:[%s1124 + $0xe] sm:$0x1]
        %v1265 = vld [vmem:[%s1124 + $0x16] sm:$0xff]
        %v1266 = vld [vmem:[%s1124 + $0x1e] sm:$0x1]
        %v1267 = vld [vmem:[%s1124 + $0x26] sm:$0xff]
        %v1268 = vld [vmem:[%s1124 + $0x2e] sm:$0x1]
        %v1269 = vlaneseq
        %v1270 = vshrl.u32 %v1269, 7
        %v1271 = vsub.s32 0, %v1270
        %v1272 = vrot.slane %v1262, %v1271
        %v1273 = vmul.f32 %v1263, %v1272
        %v1274 = vmul.f32 %v1264, %v1272
        %v1275 = vmul.f32 %v1265, %v1272
        %v1276 = vmul.f32 %v1266, %v1272
        %v1277 = vmul.f32 %v1267, %v1272
        %v1278 = vmul.f32 %v1268, %v1272
        %v1279 = vadd.f32 %v1256, %v1273
        %v1280 = vadd.f32 %v1257, %v1274
        %v1281 = vadd.f32 %v1258, %v1275
        %v1282 = vadd.f32 %v1259, %v1276
        %v1283 = vadd.f32 %v1260, %v1277
        %v1284 = vadd.f32 %v1261, %v1278
        %v1285 = vld [vmem:[%s1120 + $0x7] sm:$0x1]
        %v1286 = vld [vmem:[%s1124 + $0x7] sm:$0xff]
        %v1287 = vld [vmem:[%s1124 + $0xf] sm:$0x1]
        %v1288 = vld [vmem:[%s1124 + $0x17] sm:$0xff]
        %v1289 = vld [vmem:[%s1124 + $0x1f] sm:$0x1]
        %v1290 = vld [vmem:[%s1124 + $0x27] sm:$0xff]
        %v1291 = vld [vmem:[%s1124 + $0x2f] sm:$0x1]
        %v1292 = vlaneseq
        %v1293 = vshrl.u32 %v1292, 7
        %v1294 = vsub.s32 0, %v1293
        %v1295 = vrot.slane %v1285, %v1294
        %v1296 = vmul.f32 %v1286, %v1295
        %v1297 = vmul.f32 %v1287, %v1295
        %v1298 = vmul.f32 %v1288, %v1295
        %v1299 = vmul.f32 %v1289, %v1295
        %v1300 = vmul.f32 %v1290, %v1295
        %v1301 = vmul.f32 %v1291, %v1295
        %v1302 = vadd.f32 %v1279, %v1296
        %v1303 = vadd.f32 %v1280, %v1297
        %v1304 = vadd.f32 %v1281, %v1298
        %v1305 = vadd.f32 %v1282, %v1299
        %v1306 = vadd.f32 %v1283, %v1300
        %v1307 = vadd.f32 %v1284, %v1301
        %s1308 = scalar_lea.vmem [#allocation2], 48
        %v1309 = vld [vmem:[%s1308] sm:$0x1]
        %s1310 = sadd.s32 %s181, 6
        %s1311 = smul.u32 %s1310, 16
        %s1312 = scalar_lea.vmem [#allocation5], %s1311
        %v1313 = vld [vmem:[%s1312] sm:$0xff]
        %v1314 = vld [vmem:[%s1312 + $0x8] sm:$0x1]
        %v1315 = vld [vmem:[%s1312 + $0x10] sm:$0xff]
        %v1316 = vld [vmem:[%s1312 + $0x18] sm:$0x1]
        %v1317 = vld [vmem:[%s1312 + $0x20] sm:$0xff]
        %v1318 = vld [vmem:[%s1312 + $0x28] sm:$0x1]
        %v1319 = vlaneseq
        %v1320 = vshrl.u32 %v1319, 7
        %v1321 = vsub.s32 0, %v1320
        %v1322 = vrot.slane %v1309, %v1321
        %v1323 = vmul.f32 %v1313, %v1322
        %v1324 = vmul.f32 %v1314, %v1322
        %v1325 = vmul.f32 %v1315, %v1322
        %v1326 = vmul.f32 %v1316, %v1322
        %v1327 = vmul.f32 %v1317, %v1322
        %v1328 = vmul.f32 %v1318, %v1322
        %v1329 = vadd.f32 %v1302, %v1323
        %v1330 = vadd.f32 %v1303, %v1324
        %v1331 = vadd.f32 %v1304, %v1325
        %v1332 = vadd.f32 %v1305, %v1326
        %v1333 = vadd.f32 %v1306, %v1327
        %v1334 = vadd.f32 %v1307, %v1328
        %v1335 = vld [vmem:[%s1308 + $0x1] sm:$0x1]
        %v1336 = vld [vmem:[%s1312 + $0x1] sm:$0xff]
        %v1337 = vld [vmem:[%s1312 + $0x9] sm:$0x1]
        %v1338 = vld [vmem:[%s1312 + $0x11] sm:$0xff]
        %v1339 = vld [vmem:[%s1312 + $0x19] sm:$0x1]
        %v1340 = vld [vmem:[%s1312 + $0x21] sm:$0xff]
        %v1341 = vld [vmem:[%s1312 + $0x29] sm:$0x1]
        %v1342 = vlaneseq
        %v1343 = vshrl.u32 %v1342, 7
        %v1344 = vsub.s32 0, %v1343
        %v1345 = vrot.slane %v1335, %v1344
        %v1346 = vmul.f32 %v1336, %v1345
        %v1347 = vmul.f32 %v1337, %v1345
        %v1348 = vmul.f32 %v1338, %v1345
        %v1349 = vmul.f32 %v1339, %v1345
        %v1350 = vmul.f32 %v1340, %v1345
        %v1351 = vmul.f32 %v1341, %v1345
        %v1352 = vadd.f32 %v1329, %v1346
        %v1353 = vadd.f32 %v1330, %v1347
        %v1354 = vadd.f32 %v1331, %v1348
        %v1355 = vadd.f32 %v1332, %v1349
        %v1356 = vadd.f32 %v1333, %v1350
        %v1357 = vadd.f32 %v1334, %v1351
        %v1358 = vld [vmem:[%s1308 + $0x2] sm:$0x1]
        %v1359 = vld [vmem:[%s1312 + $0x2] sm:$0xff]
        %v1360 = vld [vmem:[%s1312 + $0xa] sm:$0x1]
        %v1361 = vld [vmem:[%s1312 + $0x12] sm:$0xff]
        %v1362 = vld [vmem:[%s1312 + $0x1a] sm:$0x1]
        %v1363 = vld [vmem:[%s1312 + $0x22] sm:$0xff]
        %v1364 = vld [vmem:[%s1312 + $0x2a] sm:$0x1]
        %v1365 = vlaneseq
        %v1366 = vshrl.u32 %v1365, 7
        %v1367 = vsub.s32 0, %v1366
        %v1368 = vrot.slane %v1358, %v1367
        %v1369 = vmul.f32 %v1359, %v1368
        %v1370 = vmul.f32 %v1360, %v1368
        %v1371 = vmul.f32 %v1361, %v1368
        %v1372 = vmul.f32 %v1362, %v1368
        %v1373 = vmul.f32 %v1363, %v1368
        %v1374 = vmul.f32 %v1364, %v1368
        %v1375 = vadd.f32 %v1352, %v1369
        %v1376 = vadd.f32 %v1353, %v1370
        %v1377 = vadd.f32 %v1354, %v1371
        %v1378 = vadd.f32 %v1355, %v1372
        %v1379 = vadd.f32 %v1356, %v1373
        %v1380 = vadd.f32 %v1357, %v1374
        %v1381 = vld [vmem:[%s1308 + $0x3] sm:$0x1]
        %v1382 = vld [vmem:[%s1312 + $0x3] sm:$0xff]
        %v1383 = vld [vmem:[%s1312 + $0xb] sm:$0x1]
        %v1384 = vld [vmem:[%s1312 + $0x13] sm:$0xff]
        %v1385 = vld [vmem:[%s1312 + $0x1b] sm:$0x1]
        %v1386 = vld [vmem:[%s1312 + $0x23] sm:$0xff]
        %v1387 = vld [vmem:[%s1312 + $0x2b] sm:$0x1]
        %v1388 = vlaneseq
        %v1389 = vshrl.u32 %v1388, 7
        %v1390 = vsub.s32 0, %v1389
        %v1391 = vrot.slane %v1381, %v1390
        %v1392 = vmul.f32 %v1382, %v1391
        %v1393 = vmul.f32 %v1383, %v1391
        %v1394 = vmul.f32 %v1384, %v1391
        %v1395 = vmul.f32 %v1385, %v1391
        %v1396 = vmul.f32 %v1386, %v1391
        %v1397 = vmul.f32 %v1387, %v1391
        %v1398 = vadd.f32 %v1375, %v1392
        %v1399 = vadd.f32 %v1376, %v1393
        %v1400 = vadd.f32 %v1377, %v1394
        %v1401 = vadd.f32 %v1378, %v1395
        %v1402 = vadd.f32 %v1379, %v1396
        %v1403 = vadd.f32 %v1380, %v1397
        %v1404 = vld [vmem:[%s1308 + $0x4] sm:$0x1]
        %v1405 = vld [vmem:[%s1312 + $0x4] sm:$0xff]
        %v1406 = vld [vmem:[%s1312 + $0xc] sm:$0x1]
        %v1407 = vld [vmem:[%s1312 + $0x14] sm:$0xff]
        %v1408 = vld [vmem:[%s1312 + $0x1c] sm:$0x1]
        %v1409 = vld [vmem:[%s1312 + $0x24] sm:$0xff]
        %v1410 = vld [vmem:[%s1312 + $0x2c] sm:$0x1]
        %v1411 = vlaneseq
        %v1412 = vshrl.u32 %v1411, 7
        %v1413 = vsub.s32 0, %v1412
        %v1414 = vrot.slane %v1404, %v1413
        %v1415 = vmul.f32 %v1405, %v1414
        %v1416 = vmul.f32 %v1406, %v1414
        %v1417 = vmul.f32 %v1407, %v1414
        %v1418 = vmul.f32 %v1408, %v1414
        %v1419 = vmul.f32 %v1409, %v1414
        %v1420 = vmul.f32 %v1410, %v1414
        %v1421 = vadd.f32 %v1398, %v1415
        %v1422 = vadd.f32 %v1399, %v1416
        %v1423 = vadd.f32 %v1400, %v1417
        %v1424 = vadd.f32 %v1401, %v1418
        %v1425 = vadd.f32 %v1402, %v1419
        %v1426 = vadd.f32 %v1403, %v1420
        %v1427 = vld [vmem:[%s1308 + $0x5] sm:$0x1]
        %v1428 = vld [vmem:[%s1312 + $0x5] sm:$0xff]
        %v1429 = vld [vmem:[%s1312 + $0xd] sm:$0x1]
        %v1430 = vld [vmem:[%s1312 + $0x15] sm:$0xff]
        %v1431 = vld [vmem:[%s1312 + $0x1d] sm:$0x1]
        %v1432 = vld [vmem:[%s1312 + $0x25] sm:$0xff]
        %v1433 = vld [vmem:[%s1312 + $0x2d] sm:$0x1]
        %v1434 = vlaneseq
        %v1435 = vshrl.u32 %v1434, 7
        %v1436 = vsub.s32 0, %v1435
        %v1437 = vrot.slane %v1427, %v1436
        %v1438 = vmul.f32 %v1428, %v1437
        %v1439 = vmul.f32 %v1429, %v1437
        %v1440 = vmul.f32 %v1430, %v1437
        %v1441 = vmul.f32 %v1431, %v1437
        %v1442 = vmul.f32 %v1432, %v1437
        %v1443 = vmul.f32 %v1433, %v1437
        %v1444 = vadd.f32 %v1421, %v1438
        %v1445 = vadd.f32 %v1422, %v1439
        %v1446 = vadd.f32 %v1423, %v1440
        %v1447 = vadd.f32 %v1424, %v1441
        %v1448 = vadd.f32 %v1425, %v1442
        %v1449 = vadd.f32 %v1426, %v1443
        %v1450 = vld [vmem:[%s1308 + $0x6] sm:$0x1]
        %v1451 = vld [vmem:[%s1312 + $0x6] sm:$0xff]
        %v1452 = vld [vmem:[%s1312 + $0xe] sm:$0x1]
        %v1453 = vld [vmem:[%s1312 + $0x16] sm:$0xff]
        %v1454 = vld [vmem:[%s1312 + $0x1e] sm:$0x1]
        %v1455 = vld [vmem:[%s1312 + $0x26] sm:$0xff]
        %v1456 = vld [vmem:[%s1312 + $0x2e] sm:$0x1]
        %v1457 = vlaneseq
        %v1458 = vshrl.u32 %v1457, 7
        %v1459 = vsub.s32 0, %v1458
        %v1460 = vrot.slane %v1450, %v1459
        %v1461 = vmul.f32 %v1451, %v1460
        %v1462 = vmul.f32 %v1452, %v1460
        %v1463 = vmul.f32 %v1453, %v1460
        %v1464 = vmul.f32 %v1454, %v1460
        %v1465 = vmul.f32 %v1455, %v1460
        %v1466 = vmul.f32 %v1456, %v1460
        %v1467 = vadd.f32 %v1444, %v1461
        %v1468 = vadd.f32 %v1445, %v1462
        %v1469 = vadd.f32 %v1446, %v1463
        %v1470 = vadd.f32 %v1447, %v1464
        %v1471 = vadd.f32 %v1448, %v1465
        %v1472 = vadd.f32 %v1449, %v1466
        %v1473 = vld [vmem:[%s1308 + $0x7] sm:$0x1]
        %v1474 = vld [vmem:[%s1312 + $0x7] sm:$0xff]
        %v1475 = vld [vmem:[%s1312 + $0xf] sm:$0x1]
        %v1476 = vld [vmem:[%s1312 + $0x17] sm:$0xff]
        %v1477 = vld [vmem:[%s1312 + $0x1f] sm:$0x1]
        %v1478 = vld [vmem:[%s1312 + $0x27] sm:$0xff]
        %v1479 = vld [vmem:[%s1312 + $0x2f] sm:$0x1]
        %v1480 = vlaneseq
        %v1481 = vshrl.u32 %v1480, 7
        %v1482 = vsub.s32 0, %v1481
        %v1483 = vrot.slane %v1473, %v1482
        %v1484 = vmul.f32 %v1474, %v1483
        %v1485 = vmul.f32 %v1475, %v1483
        %v1486 = vmul.f32 %v1476, %v1483
        %v1487 = vmul.f32 %v1477, %v1483
        %v1488 = vmul.f32 %v1478, %v1483
        %v1489 = vmul.f32 %v1479, %v1483
        %v1490 = vadd.f32 %v1467, %v1484
        %v1491 = vadd.f32 %v1468, %v1485
        %v1492 = vadd.f32 %v1469, %v1486
        %v1493 = vadd.f32 %v1470, %v1487
        %v1494 = vadd.f32 %v1471, %v1488
        %v1495 = vadd.f32 %v1472, %v1489
        %s1496 = scalar_lea.vmem [#allocation2], 56
        %v1497 = vld [vmem:[%s1496] sm:$0x1]
        %s1498 = sadd.s32 %s181, 7
        %s1499 = smul.u32 %s1498, 16
        %s1500 = scalar_lea.vmem [#allocation5], %s1499
        %v1501 = vld [vmem:[%s1500] sm:$0xff]
        %v1502 = vld [vmem:[%s1500 + $0x8] sm:$0x1]
        %v1503 = vld [vmem:[%s1500 + $0x10] sm:$0xff]
        %v1504 = vld [vmem:[%s1500 + $0x18] sm:$0x1]
        %v1505 = vld [vmem:[%s1500 + $0x20] sm:$0xff]
        %v1506 = vld [vmem:[%s1500 + $0x28] sm:$0x1]
        %v1507 = vlaneseq
        %v1508 = vshrl.u32 %v1507, 7
        %v1509 = vsub.s32 0, %v1508
        %v1510 = vrot.slane %v1497, %v1509
        %v1511 = vmul.f32 %v1501, %v1510
        %v1512 = vmul.f32 %v1502, %v1510
        %v1513 = vmul.f32 %v1503, %v1510
        %v1514 = vmul.f32 %v1504, %v1510
        %v1515 = vmul.f32 %v1505, %v1510
        %v1516 = vmul.f32 %v1506, %v1510
        %v1517 = vadd.f32 %v1490, %v1511
        %v1518 = vadd.f32 %v1491, %v1512
        %v1519 = vadd.f32 %v1492, %v1513
        %v1520 = vadd.f32 %v1493, %v1514
        %v1521 = vadd.f32 %v1494, %v1515
        %v1522 = vadd.f32 %v1495, %v1516
        %v1523 = vld [vmem:[%s1496 + $0x1] sm:$0x1]
        %v1524 = vld [vmem:[%s1500 + $0x1] sm:$0xff]
        %v1525 = vld [vmem:[%s1500 + $0x9] sm:$0x1]
        %v1526 = vld [vmem:[%s1500 + $0x11] sm:$0xff]
        %v1527 = vld [vmem:[%s1500 + $0x19] sm:$0x1]
        %v1528 = vld [vmem:[%s1500 + $0x21] sm:$0xff]
        %v1529 = vld [vmem:[%s1500 + $0x29] sm:$0x1]
        %v1530 = vlaneseq
        %v1531 = vshrl.u32 %v1530, 7
        %v1532 = vsub.s32 0, %v1531
        %v1533 = vrot.slane %v1523, %v1532
        %v1534 = vmul.f32 %v1524, %v1533
        %v1535 = vmul.f32 %v1525, %v1533
        %v1536 = vmul.f32 %v1526, %v1533
        %v1537 = vmul.f32 %v1527, %v1533
        %v1538 = vmul.f32 %v1528, %v1533
        %v1539 = vmul.f32 %v1529, %v1533
        %v1540 = vadd.f32 %v1517, %v1534
        %v1541 = vadd.f32 %v1518, %v1535
        %v1542 = vadd.f32 %v1519, %v1536
        %v1543 = vadd.f32 %v1520, %v1537
        %v1544 = vadd.f32 %v1521, %v1538
        %v1545 = vadd.f32 %v1522, %v1539
        %v1546 = vld [vmem:[%s1496 + $0x2] sm:$0x1]
        %v1547 = vld [vmem:[%s1500 + $0x2] sm:$0xff]
        %v1548 = vld [vmem:[%s1500 + $0xa] sm:$0x1]
        %v1549 = vld [vmem:[%s1500 + $0x12] sm:$0xff]
        %v1550 = vld [vmem:[%s1500 + $0x1a] sm:$0x1]
        %v1551 = vld [vmem:[%s1500 + $0x22] sm:$0xff]
        %v1552 = vld [vmem:[%s1500 + $0x2a] sm:$0x1]
        %v1553 = vlaneseq
        %v1554 = vshrl.u32 %v1553, 7
        %v1555 = vsub.s32 0, %v1554
        %v1556 = vrot.slane %v1546, %v1555
        %v1557 = vmul.f32 %v1547, %v1556
        %v1558 = vmul.f32 %v1548, %v1556
        %v1559 = vmul.f32 %v1549, %v1556
        %v1560 = vmul.f32 %v1550, %v1556
        %v1561 = vmul.f32 %v1551, %v1556
        %v1562 = vmul.f32 %v1552, %v1556
        %v1563 = vadd.f32 %v1540, %v1557
        %v1564 = vadd.f32 %v1541, %v1558
        %v1565 = vadd.f32 %v1542, %v1559
        %v1566 = vadd.f32 %v1543, %v1560
        %v1567 = vadd.f32 %v1544, %v1561
        %v1568 = vadd.f32 %v1545, %v1562
        %v1569 = vld [vmem:[%s1496 + $0x3] sm:$0x1]
        %v1570 = vld [vmem:[%s1500 + $0x3] sm:$0xff]
        %v1571 = vld [vmem:[%s1500 + $0xb] sm:$0x1]
        %v1572 = vld [vmem:[%s1500 + $0x13] sm:$0xff]
        %v1573 = vld [vmem:[%s1500 + $0x1b] sm:$0x1]
        %v1574 = vld [vmem:[%s1500 + $0x23] sm:$0xff]
        %v1575 = vld [vmem:[%s1500 + $0x2b] sm:$0x1]
        %v1576 = vlaneseq
        %v1577 = vshrl.u32 %v1576, 7
        %v1578 = vsub.s32 0, %v1577
        %v1579 = vrot.slane %v1569, %v1578
        %v1580 = vmul.f32 %v1570, %v1579
        %v1581 = vmul.f32 %v1571, %v1579
        %v1582 = vmul.f32 %v1572, %v1579
        %v1583 = vmul.f32 %v1573, %v1579
        %v1584 = vmul.f32 %v1574, %v1579
        %v1585 = vmul.f32 %v1575, %v1579
        %v1586 = vadd.f32 %v1563, %v1580
        %v1587 = vadd.f32 %v1564, %v1581
        %v1588 = vadd.f32 %v1565, %v1582
        %v1589 = vadd.f32 %v1566, %v1583
        %v1590 = vadd.f32 %v1567, %v1584
        %v1591 = vadd.f32 %v1568, %v1585
        %v1592 = vld [vmem:[%s1496 + $0x4] sm:$0x1]
        %v1593 = vld [vmem:[%s1500 + $0x4] sm:$0xff]
        %v1594 = vld [vmem:[%s1500 + $0xc] sm:$0x1]
        %v1595 = vld [vmem:[%s1500 + $0x14] sm:$0xff]
        %v1596 = vld [vmem:[%s1500 + $0x1c] sm:$0x1]
        %v1597 = vld [vmem:[%s1500 + $0x24] sm:$0xff]
        %v1598 = vld [vmem:[%s1500 + $0x2c] sm:$0x1]
        %v1599 = vlaneseq
        %v1600 = vshrl.u32 %v1599, 7
        %v1601 = vsub.s32 0, %v1600
        %v1602 = vrot.slane %v1592, %v1601
        %v1603 = vmul.f32 %v1593, %v1602
        %v1604 = vmul.f32 %v1594, %v1602
        %v1605 = vmul.f32 %v1595, %v1602
        %v1606 = vmul.f32 %v1596, %v1602
        %v1607 = vmul.f32 %v1597, %v1602
        %v1608 = vmul.f32 %v1598, %v1602
        %v1609 = vadd.f32 %v1586, %v1603
        %v1610 = vadd.f32 %v1587, %v1604
        %v1611 = vadd.f32 %v1588, %v1605
        %v1612 = vadd.f32 %v1589, %v1606
        %v1613 = vadd.f32 %v1590, %v1607
        %v1614 = vadd.f32 %v1591, %v1608
        %v1615 = vld [vmem:[%s1496 + $0x5] sm:$0x1]
        %v1616 = vld [vmem:[%s1500 + $0x5] sm:$0xff]
        %v1617 = vld [vmem:[%s1500 + $0xd] sm:$0x1]
        %v1618 = vld [vmem:[%s1500 + $0x15] sm:$0xff]
        %v1619 = vld [vmem:[%s1500 + $0x1d] sm:$0x1]
        %v1620 = vld [vmem:[%s1500 + $0x25] sm:$0xff]
        %v1621 = vld [vmem:[%s1500 + $0x2d] sm:$0x1]
        %v1622 = vlaneseq
        %v1623 = vshrl.u32 %v1622, 7
        %v1624 = vsub.s32 0, %v1623
        %v1625 = vrot.slane %v1615, %v1624
        %v1626 = vmul.f32 %v1616, %v1625
        %v1627 = vmul.f32 %v1617, %v1625
        %v1628 = vmul.f32 %v1618, %v1625
        %v1629 = vmul.f32 %v1619, %v1625
        %v1630 = vmul.f32 %v1620, %v1625
        %v1631 = vmul.f32 %v1621, %v1625
        %v1632 = vadd.f32 %v1609, %v1626
        %v1633 = vadd.f32 %v1610, %v1627
        %v1634 = vadd.f32 %v1611, %v1628
        %v1635 = vadd.f32 %v1612, %v1629
        %v1636 = vadd.f32 %v1613, %v1630
        %v1637 = vadd.f32 %v1614, %v1631
        %v1638 = vld [vmem:[%s1496 + $0x6] sm:$0x1]
        %v1639 = vld [vmem:[%s1500 + $0x6] sm:$0xff]
        %v1640 = vld [vmem:[%s1500 + $0xe] sm:$0x1]
        %v1641 = vld [vmem:[%s1500 + $0x16] sm:$0xff]
        %v1642 = vld [vmem:[%s1500 + $0x1e] sm:$0x1]
        %v1643 = vld [vmem:[%s1500 + $0x26] sm:$0xff]
        %v1644 = vld [vmem:[%s1500 + $0x2e] sm:$0x1]
        %v1645 = vlaneseq
        %v1646 = vshrl.u32 %v1645, 7
        %v1647 = vsub.s32 0, %v1646
        %v1648 = vrot.slane %v1638, %v1647
        %v1649 = vmul.f32 %v1639, %v1648
        %v1650 = vmul.f32 %v1640, %v1648
        %v1651 = vmul.f32 %v1641, %v1648
        %v1652 = vmul.f32 %v1642, %v1648
        %v1653 = vmul.f32 %v1643, %v1648
        %v1654 = vmul.f32 %v1644, %v1648
        %v1655 = vadd.f32 %v1632, %v1649
        %v1656 = vadd.f32 %v1633, %v1650
        %v1657 = vadd.f32 %v1634, %v1651
        %v1658 = vadd.f32 %v1635, %v1652
        %v1659 = vadd.f32 %v1636, %v1653
        %v1660 = vadd.f32 %v1637, %v1654
        %v1661 = vld [vmem:[%s1496 + $0x7] sm:$0x1]
        %v1662 = vld [vmem:[%s1500 + $0x7] sm:$0xff]
        %v1663 = vld [vmem:[%s1500 + $0xf] sm:$0x1]
        %v1664 = vld [vmem:[%s1500 + $0x17] sm:$0xff]
        %v1665 = vld [vmem:[%s1500 + $0x1f] sm:$0x1]
        %v1666 = vld [vmem:[%s1500 + $0x27] sm:$0xff]
        %v1667 = vld [vmem:[%s1500 + $0x2f] sm:$0x1]
        %v1668 = vlaneseq
        %v1669 = vshrl.u32 %v1668, 7
        %v1670 = vsub.s32 0, %v1669
        %v1671 = vrot.slane %v1661, %v1670
        %v1672 = vmul.f32 %v1662, %v1671
        %v1673 = vmul.f32 %v1663, %v1671
        %v1674 = vmul.f32 %v1664, %v1671
        %v1675 = vmul.f32 %v1665, %v1671
        %v1676 = vmul.f32 %v1666, %v1671
        %v1677 = vmul.f32 %v1667, %v1671
        %v1678 = vadd.f32 %v1655, %v1672
        %v1679 = vadd.f32 %v1656, %v1673
        %v1680 = vadd.f32 %v1657, %v1674
        %v1681 = vadd.f32 %v1658, %v1675
        %v1682 = vadd.f32 %v1659, %v1676
        %v1683 = vadd.f32 %v1660, %v1677
        %vm1684 = vcmask 523264
        %1685 = vst.msk [vmem:[%s179] sm:$0xff] %vm1684, %v1678
        %vm1686 = vcmask 516096
        %1687 = vst.msk [vmem:[%s179 + $0x8] sm:$0x1] %vm1686, %v1679
        %1688 = vst.msk [vmem:[%s179 + $0x10] sm:$0xff] %vm1684, %v1680
        %1689 = vst.msk [vmem:[%s179 + $0x18] sm:$0x1] %vm1686, %v1681
        %1690 = vst.msk [vmem:[%s179 + $0x20] sm:$0xff] %vm1684, %v1682
        %1691 = vst.msk [vmem:[%s179 + $0x28] sm:$0x1] %vm1686, %v1683
        %s1692 = sand.u32 %s92, 1
        %s1693 = scalar_lea.sflag [#allocation4], %s1692
        %s1694 = sand.u32 %s92, 1
        %s1695 = smul.addr %s1694, 48
        %s1696 = scalar_lea.vmem [#allocation7], %s1695
        // Predicated region
        $region37: #{tpu_custom_call.1} parent=27 // pred_check
          %p1697 = pneg %p102
        $region38: #{tpu_custom_call.1} parent=27 // pred_check_branch
          %1699 = sbr.rel (%p1697) target = $region40
        $region39: #{tpu_custom_call.1} parent=27 // pred_region
          %s1700 = smul.u32 3, %s23
          %s1702 = ssub.s32 768, 768
          %1703 = vsyncadd %s1693, %s1702
          %s1704 = smul.addr %s1700, 2
          %s1705 = sadd.s32 %s22, %s1704
          %s1706 = smul.addr %s1705, 128
          %s1707 = scalar_lea.hbm %s2, %s1706
          %s1708 = sshll.u32 %s1696, 4
          %s1709 = int_to_ptr.vmem [resolvable:$true] %s1708
          %1714 = dma.vmem_to_hbm [thread:$0]  %s1709, 768, %s1707, %s1693, 128, 128, 8
        $region40: #{tpu_custom_call.1} parent=27 // pred_fallthru
          _
      $region28: #{tpu_custom_call.1} parent=5 // pred_fallthru
        _
      %p1715 = scmp.le.s32.totalorder 2, %s13
      // Predicated region
      $region41: #{tpu_custom_call.1} parent=5 // pred_check
        %p1716 = pneg %p1715
      $region42: #{tpu_custom_call.1} parent=5 // pred_check_branch
        %1718 = sbr.rel (%p1716) target = $region44
      $region43: #{tpu_custom_call.1} parent=5 // pred_region
        %s1719 = ssub.s32 %s13, 2
        // Predicated region
        $region45: #{tpu_custom_call.1} parent=43 // pred_check
          %p1720 = pneg %p108
        $region46: #{tpu_custom_call.1} parent=43 // pred_check_branch
          %1722 = sbr.rel (%p1720) target = $region48
        $region47: #{tpu_custom_call.1} parent=43 // pred_region
          %s1723 = sand.u32 %s93, 1
          %s1724 = scalar_lea.sflag [#allocation4], %s1723
          %s1725 = sand.u32 %s93, 1
          %s1726 = smul.addr %s1725, 48
          %s1727 = scalar_lea.vmem [#allocation7], %s1726
          %1728 = dma.done %s1724, 768
        $region48: #{tpu_custom_call.1} parent=43 // pred_fallthru
          _
      $region44: #{tpu_custom_call.1} parent=5 // pred_fallthru
        _
    $region6: #{tpu_custom_call.1} parent=1 // loop_footer
      %s17 = sadd.s32 1, %s13
    $region7: #{tpu_custom_call.1} parent=1 // loop_footer_branch
      %12 = sbr.rel target = $region3
    $region8: #{tpu_custom_call.1} parent=1 // loop_exit
      _
    %1729 = vsyncpa [#allocation3], 1
    %s1730 = scalar_lea.sflag [#allocation3], 1
    %1731 = vsyncpa %s1730, 1
    %1732 = vsyncpa [#allocation6], 1
    %1733 = vsyncpa [#allocation4], 1
    %s1734 = scalar_lea.sflag [#allocation4], 1
    %1735 = vsyncpa %s1734, 1

</llo_original>
